<compile_context>
chip_gen: v6e
topology: v6e:2x2x1
jax: 0.10.0
libtpu: 0.0.40
codegen_flags: <defaults>
</compile_context>

<pallas_src>
import functools

import jax
import jax.numpy as jnp
from jax import lax
from jax.experimental import pallas as pl
from jax.experimental.pallas import tpu as pltpu

EPS = 1e-5


def _conv_stats_kernel(x_ref, wd_ref, wp_ref, y_ref, stats_ref, *,
                       cin, cout, stride, th_out, w_out):
    """ReLU -> depthwise 3x3 -> pointwise 1x1 for one (batch, row-tile) block.

    x_ref:     (1, 1, cin, th_in, w_in) VMEM  zero-padded input tile (with halo)
    wd_ref:    (cin, 9)                 SMEM  depthwise weights, 3x3 flattened
    wp_ref:    (cout, cin)              SMEM  pointwise weights
    y_ref:     (1, cout, th_out, w_out) VMEM  pre-BN conv output (NCHW tile)
    stats_ref: (1, 1, 2, cout, w_out)   VMEM  per-tile partial sum / sum-of-squares
    """
    y_acc = [jnp.zeros((th_out, w_out), jnp.float32) for _ in range(cout)]

    for c in range(cin):
        if stride == 1:
            # ReLU once per channel (zero padding commutes with ReLU).
            xc = jnp.maximum(x_ref[0, 0, c], 0.0)
        acc = jnp.zeros((th_out, w_out), jnp.float32)
        for kh in range(3):
            for kw in range(3):
                if stride == 1:
                    win = xc[kh:kh + th_out, kw:kw + w_out]
                else:
                    # Subsample BEFORE the MAC: strided ref load, stride^2 less work.
                    win = jnp.maximum(
                        x_ref[0, 0, c,
                              pl.ds(kh, th_out, stride),
                              pl.ds(kw, w_out, stride)], 0.0)
                acc = acc + win * wd_ref[c, kh * 3 + kw]
        # Pointwise 1x1 for tiny channel counts: VPU scalar-broadcast FMA
        # (an MXU matmul would run at <1% utilization with K=4, N=8).
        for co in range(cout):
            y_acc[co] = y_acc[co] + acc * wp_ref[co, c]

    sum_rows = []
    sq_rows = []
    for co in range(cout):
        yco = y_acc[co]
        y_ref[0, co] = yco
        sum_rows.append(jnp.sum(yco, axis=0, keepdims=True))        # (1, w_out)
        sq_rows.append(jnp.sum(yco * yco, axis=0, keepdims=True))   # (1, w_out)
    stats_ref[0, 0, 0] = jnp.concatenate(sum_rows, axis=0)          # (cout, w_out)
    stats_ref[0, 0, 1] = jnp.concatenate(sq_rows, axis=0)           # (cout, w_out)


def _bn_apply_kernel(y_ref, scale_ref, shift_ref, out_ref, *, cout):
    """Apply the precomputed BatchNorm scale/shift per channel, tiled."""
    for co in range(cout):
        out_ref[0, co] = y_ref[0, co] * scale_ref[0, co] + shift_ref[0, co]


def unit_forward(x_nchw, wd_torch, wp_torch, gamma, beta, stride=1, tile_h=8):
    """Forward pass of Unit.

    x_nchw:   (N, Cin, H, W) float32
    wd_torch: (Cin, 1, 3, 3)   depthwise conv weight (PyTorch layout)
    wp_torch: (Cout, Cin, 1, 1) pointwise conv weight (PyTorch layout)
    gamma, beta: (Cout,) BatchNorm affine params
    returns:  (N, Cout, H_out, W_out) float32
    """
    n, cin, h, w = x_nchw.shape
    cout = wp_torch.shape[0]
    h_out = (h + 2 - 3) // stride + 1
    w_out = (w + 2 - 3) // stride + 1

    # Row-tile size: the block's second-to-last dim must be a multiple of 8 or the
    # full extent.
    if h_out % tile_h == 0 and tile_h % 8 == 0:
        th_out = tile_h
    else:
        th_out = h_out
    n_ht = h_out // th_out
    th_in = (th_out - 1) * stride + 3
    w_in = w + 2

    x = x_nchw.astype(jnp.float32)
    # Zero-pad H/W by 1 (padding commutes with the in-kernel ReLU).
    x_pad = jnp.pad(x, ((0, 0), (0, 0), (1, 1), (1, 1)))
    # Materialize overlapping (halo) row tiles so plain Blocked BlockSpecs tile them.
    row_start = jnp.arange(n_ht) * (th_out * stride)
    rows = row_start[:, None] + jnp.arange(th_in)[None, :]     # (n_ht, th_in)
    x_tiled = x_pad[:, :, rows, :]                             # (N, C, n_ht, th_in, w_in)
    x_tiled = jnp.transpose(x_tiled, (0, 2, 1, 3, 4))          # (N, n_ht, C, th_in, w_in)

    wd_flat = wd_torch[:, 0, :, :].reshape(cin, 9).astype(jnp.float32)  # (cin, 9)
    wp = wp_torch[:, :, 0, 0].astype(jnp.float32)                       # (cout, cin)
    # TODO(synk): for Cin/Cout >= 128, switch the pointwise path to an MXU matmul
    # (channels on the lane axis) and cast inputs/weights to bf16 on v6e/v7x.

    smem = pl.BlockSpec(memory_space=pltpu.MemorySpace.SMEM)
    cparams = pltpu.CompilerParams(
        dimension_semantics=("parallel", "parallel"),
        vmem_limit_bytes=32 * 1024 * 1024)

    conv_kernel = functools.partial(
        _conv_stats_kernel, cin=cin, cout=cout, stride=stride,
        th_out=th_out, w_out=w_out)

    y_conv, stats = pl.pallas_call(
        conv_kernel,
        grid=(n, n_ht),
        in_specs=[
            pl.BlockSpec((1, 1, cin, th_in, w_in), lambda b, t: (b, t, 0, 0, 0)),
            smem,   # depthwise weights (scalar reads)
            smem,   # pointwise weights (scalar reads)
        ],
        out_specs=(
            pl.BlockSpec((1, cout, th_out, w_out), lambda b, t: (b, 0, t, 0)),
            pl.BlockSpec((1, 1, 2, cout, w_out), lambda b, t: (b, t, 0, 0, 0)),
        ),
        out_shape=(
            jax.ShapeDtypeStruct((n, cout, h_out, w_out), jnp.float32),
            jax.ShapeDtypeStruct((n, n_ht, 2, cout, w_out), jnp.float32),
        ),
        compiler_params=cparams,
    )(x_tiled, wd_flat, wp)

    # Finalize BatchNorm statistics on tiny (2, Cout) arrays in plain JAX.
    tot = jnp.sum(stats, axis=(0, 1, 4))            # (2, cout)
    count = float(n * h_out * w_out)
    mean = tot[0] / count
    var = tot[1] / count - mean * mean              # biased variance (training mode)
    scale = gamma.astype(jnp.float32) * lax.rsqrt(var + EPS)
    shift = beta.astype(jnp.float32) - mean * scale

    bn_kernel = functools.partial(_bn_apply_kernel, cout=cout)
    out = pl.pallas_call(
        bn_kernel,
        grid=(n, n_ht),
        in_specs=[
            pl.BlockSpec((1, cout, th_out, w_out), lambda b, t: (b, 0, t, 0)),
            smem,   # scale
            smem,   # shift
        ],
        out_specs=pl.BlockSpec((1, cout, th_out, w_out), lambda b, t: (b, 0, t, 0)),
        out_shape=jax.ShapeDtypeStruct((n, cout, h_out, w_out), jnp.float32),
        compiler_params=cparams,
    )(y_conv, scale.reshape(1, cout), shift.reshape(1, cout))

    return out


def _reference(x_nchw, wd_torch, wp_torch, gamma, beta, stride=1):
    """Pure-JAX reference mirroring the PyTorch ops (NCHW)."""
    xr = jnp.maximum(x_nchw, 0.0)
    cin = x_nchw.shape[1]
    dw = lax.conv_general_dilated(
        xr, wd_torch, window_strides=(stride, stride), padding=((1, 1), (1, 1)),
        feature_group_count=cin, dimension_numbers=("NCHW", "OIHW", "NCHW"))
    pw = lax.conv_general_dilated(
        dw, wp_torch, window_strides=(1, 1), padding=((0, 0), (0, 0)),
        dimension_numbers=("NCHW", "OIHW", "NCHW"))
    mean = jnp.mean(pw, axis=(0, 2, 3), keepdims=True)
    var = jnp.mean((pw - mean) ** 2, axis=(0, 2, 3), keepdims=True)
    y = (pw - mean) * lax.rsqrt(var + EPS)
    return y * gamma.reshape(1, -1, 1, 1) + beta.reshape(1, -1, 1, 1)


if __name__ == "__main__":
    key = jax.random.PRNGKey(0)
    k_x, k_dw, k_pw = jax.random.split(key, 3)

    N, CIN, H, W = 2, 4, 16, 16
    COUT = 8
    STRIDE = 1

    x = jax.random.normal(k_x, (N, CIN, H, W), jnp.float32)

    # Xavier-uniform init (matching weights_init semantics), deterministic.
    # depthwise weight (Cin, 1, 3, 3): fan_in = fan_out = 9
    bound_dw = (6.0 / (9 + 9)) ** 0.5
    wd_torch = jax.random.uniform(k_dw, (CIN, 1, 3, 3), jnp.float32,
                                  minval=-bound_dw, maxval=bound_dw)
    # pointwise weight (Cout, Cin, 1, 1): fan_in = Cin, fan_out = Cout
    bound_pw = (6.0 / (CIN + COUT)) ** 0.5
    wp_torch = jax.random.uniform(k_pw, (COUT, CIN, 1, 1), jnp.float32,
                                  minval=-bound_pw, maxval=bound_pw)
    gamma = jnp.ones((COUT,), jnp.float32)
    beta = jnp.zeros((COUT,), jnp.float32)

    out = unit_forward(x, wd_torch, wp_torch, gamma, beta, stride=STRIDE)
    out = jax.block_until_ready(out)

    ref = _reference(x, wd_torch, wp_torch, gamma, beta, stride=STRIDE)
    assert out.shape == (N, COUT, H, W), out.shape
    err = float(jnp.max(jnp.abs(out - ref)))
    assert jnp.allclose(out, ref, atol=2e-4, rtol=2e-4), err

    print("KERNEL_OK")
</pallas_src>

<mosaic_0001>
module attributes {stable_mosaic.version = 11 : i64} {
  func.func @_conv_stats_kernel(%arg0: i32, %arg1: i32, %arg2: memref<1x1x4x10x18xf32, #tpu.memory_space<vmem>>, %arg3: memref<4x9xf32, #tpu.memory_space<smem>>, %arg4: memref<8x4xf32, #tpu.memory_space<smem>>, %arg5: memref<1x8x8x16xf32, #tpu.memory_space<vmem>>, %arg6: memref<1x1x2x8x16xf32, #tpu.memory_space<vmem>>) attributes {dimension_semantics = [#tpu.dimension_semantics<parallel>, #tpu.dimension_semantics<parallel>], iteration_bounds = array<i64: 2, 2>, scalar_prefetch = 0 : i64, scratch_operands = 0 : i64, tpu.core_type = #tpu.core_type<tc>, window_params = [{transform_indices = @transform_0, window_bounds = array<i64: 1, 1, 4, 10, 18>}, {transform_indices = @transform_1, window_bounds = array<i64: 4, 9>}, {transform_indices = @transform_2, window_bounds = array<i64: 8, 4>}, {transform_indices = @transform_3, window_bounds = array<i64: 1, 8, 8, 16>}, {transform_indices = @transform_4, window_bounds = array<i64: 1, 1, 2, 8, 16>}]} {
    %cst = arith.constant 0.000000e+00 : f32
    %0 = vector.broadcast %cst : f32 to vector<8x16xf32>
    %cst_0 = arith.constant 0.000000e+00 : f32
    %1 = vector.broadcast %cst_0 : f32 to vector<8x16xf32>
    %cst_1 = arith.constant 0.000000e+00 : f32
    %2 = vector.broadcast %cst_1 : f32 to vector<8x16xf32>
    %cst_2 = arith.constant 0.000000e+00 : f32
    %3 = vector.broadcast %cst_2 : f32 to vector<8x16xf32>
    %cst_3 = arith.constant 0.000000e+00 : f32
    %4 = vector.broadcast %cst_3 : f32 to vector<8x16xf32>
    %cst_4 = arith.constant 0.000000e+00 : f32
    %5 = vector.broadcast %cst_4 : f32 to vector<8x16xf32>
    %cst_5 = arith.constant 0.000000e+00 : f32
    %6 = vector.broadcast %cst_5 : f32 to vector<8x16xf32>
    %cst_6 = arith.constant 0.000000e+00 : f32
    %7 = vector.broadcast %cst_6 : f32 to vector<8x16xf32>
    %c0 = arith.constant 0 : index
    %c0_7 = arith.constant 0 : index
    %c0_8 = arith.constant 0 : index
    %c0_9 = arith.constant 0 : index
    %c0_10 = arith.constant 0 : index
    %8 = vector.load %arg2[%c0, %c0_7, %c0_8, %c0_9, %c0_10] : memref<1x1x4x10x18xf32, #tpu.memory_space<vmem>>, vector<1x1x1x10x18xf32>
    %9 = vector.shape_cast %8 : vector<1x1x1x10x18xf32> to vector<10x18xf32>
    %cst_11 = arith.constant 0.000000e+00 : f32
    %10 = vector.broadcast %cst_11 : f32 to vector<10x18xf32>
    %11 = arith.maximumf %9, %10 : vector<10x18xf32>
    %cst_12 = arith.constant 0.000000e+00 : f32
    %12 = vector.broadcast %cst_12 : f32 to vector<8x16xf32>
    %13 = vector.extract_strided_slice %11 {offsets = [0, 0], sizes = [8, 16], strides = [1, 1]} : vector<10x18xf32> to vector<8x16xf32>
    %c0_13 = arith.constant 0 : index
    %c0_14 = arith.constant 0 : index
    %14 = memref.load %arg3[%c0_13, %c0_14] : memref<4x9xf32, #tpu.memory_space<smem>>
    %15 = vector.broadcast %14 : f32 to vector<8x16xf32>
    %16 = arith.mulf %13, %15 : vector<8x16xf32>
    %17 = arith.addf %12, %16 : vector<8x16xf32>
    %18 = vector.extract_strided_slice %11 {offsets = [0, 1], sizes = [8, 16], strides = [1, 1]} : vector<10x18xf32> to vector<8x16xf32>
    %c0_15 = arith.constant 0 : index
    %c1 = arith.constant 1 : index
    %19 = memref.load %arg3[%c0_15, %c1] : memref<4x9xf32, #tpu.memory_space<smem>>
    %20 = vector.broadcast %19 : f32 to vector<8x16xf32>
    %21 = arith.mulf %18, %20 : vector<8x16xf32>
    %22 = arith.addf %17, %21 : vector<8x16xf32>
    %23 = vector.extract_strided_slice %11 {offsets = [0, 2], sizes = [8, 16], strides = [1, 1]} : vector<10x18xf32> to vector<8x16xf32>
    %c0_16 = arith.constant 0 : index
    %c2 = arith.constant 2 : index
    %24 = memref.load %arg3[%c0_16, %c2] : memref<4x9xf32, #tpu.memory_space<smem>>
    %25 = vector.broadcast %24 : f32 to vector<8x16xf32>
    %26 = arith.mulf %23, %25 : vector<8x16xf32>
    %27 = arith.addf %22, %26 : vector<8x16xf32>
    %28 = vector.extract_strided_slice %11 {offsets = [1, 0], sizes = [8, 16], strides = [1, 1]} : vector<10x18xf32> to vector<8x16xf32>
    %c0_17 = arith.constant 0 : index
    %c3 = arith.constant 3 : index
    %29 = memref.load %arg3[%c0_17, %c3] : memref<4x9xf32, #tpu.memory_space<smem>>
    %30 = vector.broadcast %29 : f32 to vector<8x16xf32>
    %31 = arith.mulf %28, %30 : vector<8x16xf32>
    %32 = arith.addf %27, %31 : vector<8x16xf32>
    %33 = vector.extract_strided_slice %11 {offsets = [1, 1], sizes = [8, 16], strides = [1, 1]} : vector<10x18xf32> to vector<8x16xf32>
    %c0_18 = arith.constant 0 : index
    %c4 = arith.constant 4 : index
    %34 = memref.load %arg3[%c0_18, %c4] : memref<4x9xf32, #tpu.memory_space<smem>>
    %35 = vector.broadcast %34 : f32 to vector<8x16xf32>
    %36 = arith.mulf %33, %35 : vector<8x16xf32>
    %37 = arith.addf %32, %36 : vector<8x16xf32>
    %38 = vector.extract_strided_slice %11 {offsets = [1, 2], sizes = [8, 16], strides = [1, 1]} : vector<10x18xf32> to vector<8x16xf32>
    %c0_19 = arith.constant 0 : index
    %c5 = arith.constant 5 : index
    %39 = memref.load %arg3[%c0_19, %c5] : memref<4x9xf32, #tpu.memory_space<smem>>
    %40 = vector.broadcast %39 : f32 to vector<8x16xf32>
    %41 = arith.mulf %38, %40 : vector<8x16xf32>
    %42 = arith.addf %37, %41 : vector<8x16xf32>
    %43 = vector.extract_strided_slice %11 {offsets = [2, 0], sizes = [8, 16], strides = [1, 1]} : vector<10x18xf32> to vector<8x16xf32>
    %c0_20 = arith.constant 0 : index
    %c6 = arith.constant 6 : index
    %44 = memref.load %arg3[%c0_20, %c6] : memref<4x9xf32, #tpu.memory_space<smem>>
    %45 = vector.broadcast %44 : f32 to vector<8x16xf32>
    %46 = arith.mulf %43, %45 : vector<8x16xf32>
    %47 = arith.addf %42, %46 : vector<8x16xf32>
    %48 = vector.extract_strided_slice %11 {offsets = [2, 1], sizes = [8, 16], strides = [1, 1]} : vector<10x18xf32> to vector<8x16xf32>
    %c0_21 = arith.constant 0 : index
    %c7 = arith.constant 7 : index
    %49 = memref.load %arg3[%c0_21, %c7] : memref<4x9xf32, #tpu.memory_space<smem>>
    %50 = vector.broadcast %49 : f32 to vector<8x16xf32>
    %51 = arith.mulf %48, %50 : vector<8x16xf32>
    %52 = arith.addf %47, %51 : vector<8x16xf32>
    %53 = vector.extract_strided_slice %11 {offsets = [2, 2], sizes = [8, 16], strides = [1, 1]} : vector<10x18xf32> to vector<8x16xf32>
    %c0_22 = arith.constant 0 : index
    %c8 = arith.constant 8 : index
    %54 = memref.load %arg3[%c0_22, %c8] : memref<4x9xf32, #tpu.memory_space<smem>>
    %55 = vector.broadcast %54 : f32 to vector<8x16xf32>
    %56 = arith.mulf %53, %55 : vector<8x16xf32>
    %57 = arith.addf %52, %56 : vector<8x16xf32>
    %c0_23 = arith.constant 0 : index
    %c0_24 = arith.constant 0 : index
    %58 = memref.load %arg4[%c0_23, %c0_24] : memref<8x4xf32, #tpu.memory_space<smem>>
    %59 = vector.broadcast %58 : f32 to vector<8x16xf32>
    %60 = arith.mulf %57, %59 : vector<8x16xf32>
    %61 = arith.addf %0, %60 : vector<8x16xf32>
    %c1_25 = arith.constant 1 : index
    %c0_26 = arith.constant 0 : index
    %62 = memref.load %arg4[%c1_25, %c0_26] : memref<8x4xf32, #tpu.memory_space<smem>>
    %63 = vector.broadcast %62 : f32 to vector<8x16xf32>
    %64 = arith.mulf %57, %63 : vector<8x16xf32>
    %65 = arith.addf %1, %64 : vector<8x16xf32>
    %c2_27 = arith.constant 2 : index
    %c0_28 = arith.constant 0 : index
    %66 = memref.load %arg4[%c2_27, %c0_28] : memref<8x4xf32, #tpu.memory_space<smem>>
    %67 = vector.broadcast %66 : f32 to vector<8x16xf32>
    %68 = arith.mulf %57, %67 : vector<8x16xf32>
    %69 = arith.addf %2, %68 : vector<8x16xf32>
    %c3_29 = arith.constant 3 : index
    %c0_30 = arith.constant 0 : index
    %70 = memref.load %arg4[%c3_29, %c0_30] : memref<8x4xf32, #tpu.memory_space<smem>>
    %71 = vector.broadcast %70 : f32 to vector<8x16xf32>
    %72 = arith.mulf %57, %71 : vector<8x16xf32>
    %73 = arith.addf %3, %72 : vector<8x16xf32>
    %c4_31 = arith.constant 4 : index
    %c0_32 = arith.constant 0 : index
    %74 = memref.load %arg4[%c4_31, %c0_32] : memref<8x4xf32, #tpu.memory_space<smem>>
    %75 = vector.broadcast %74 : f32 to vector<8x16xf32>
    %76 = arith.mulf %57, %75 : vector<8x16xf32>
    %77 = arith.addf %4, %76 : vector<8x16xf32>
    %c5_33 = arith.constant 5 : index
    %c0_34 = arith.constant 0 : index
    %78 = memref.load %arg4[%c5_33, %c0_34] : memref<8x4xf32, #tpu.memory_space<smem>>
    %79 = vector.broadcast %78 : f32 to vector<8x16xf32>
    %80 = arith.mulf %57, %79 : vector<8x16xf32>
    %81 = arith.addf %5, %80 : vector<8x16xf32>
    %c6_35 = arith.constant 6 : index
    %c0_36 = arith.constant 0 : index
    %82 = memref.load %arg4[%c6_35, %c0_36] : memref<8x4xf32, #tpu.memory_space<smem>>
    %83 = vector.broadcast %82 : f32 to vector<8x16xf32>
    %84 = arith.mulf %57, %83 : vector<8x16xf32>
    %85 = arith.addf %6, %84 : vector<8x16xf32>
    %c7_37 = arith.constant 7 : index
    %c0_38 = arith.constant 0 : index
    %86 = memref.load %arg4[%c7_37, %c0_38] : memref<8x4xf32, #tpu.memory_space<smem>>
    %87 = vector.broadcast %86 : f32 to vector<8x16xf32>
    %88 = arith.mulf %57, %87 : vector<8x16xf32>
    %89 = arith.addf %7, %88 : vector<8x16xf32>
    %c0_39 = arith.constant 0 : index
    %c0_40 = arith.constant 0 : index
    %c1_41 = arith.constant 1 : index
    %c0_42 = arith.constant 0 : index
    %c0_43 = arith.constant 0 : index
    %90 = vector.load %arg2[%c0_39, %c0_40, %c1_41, %c0_42, %c0_43] : memref<1x1x4x10x18xf32, #tpu.memory_space<vmem>>, vector<1x1x1x10x18xf32>
    %91 = vector.shape_cast %90 : vector<1x1x1x10x18xf32> to vector<10x18xf32>
    %cst_44 = arith.constant 0.000000e+00 : f32
    %92 = vector.broadcast %cst_44 : f32 to vector<10x18xf32>
    %93 = arith.maximumf %91, %92 : vector<10x18xf32>
    %cst_45 = arith.constant 0.000000e+00 : f32
    %94 = vector.broadcast %cst_45 : f32 to vector<8x16xf32>
    %95 = vector.extract_strided_slice %93 {offsets = [0, 0], sizes = [8, 16], strides = [1, 1]} : vector<10x18xf32> to vector<8x16xf32>
    %c1_46 = arith.constant 1 : index
    %c0_47 = arith.constant 0 : index
    %96 = memref.load %arg3[%c1_46, %c0_47] : memref<4x9xf32, #tpu.memory_space<smem>>
    %97 = vector.broadcast %96 : f32 to vector<8x16xf32>
    %98 = arith.mulf %95, %97 : vector<8x16xf32>
    %99 = arith.addf %94, %98 : vector<8x16xf32>
    %100 = vector.extract_strided_slice %93 {offsets = [0, 1], sizes = [8, 16], strides = [1, 1]} : vector<10x18xf32> to vector<8x16xf32>
    %c1_48 = arith.constant 1 : index
    %c1_49 = arith.constant 1 : index
    %101 = memref.load %arg3[%c1_48, %c1_49] : memref<4x9xf32, #tpu.memory_space<smem>>
    %102 = vector.broadcast %101 : f32 to vector<8x16xf32>
    %103 = arith.mulf %100, %102 : vector<8x16xf32>
    %104 = arith.addf %99, %103 : vector<8x16xf32>
    %105 = vector.extract_strided_slice %93 {offsets = [0, 2], sizes = [8, 16], strides = [1, 1]} : vector<10x18xf32> to vector<8x16xf32>
    %c1_50 = arith.constant 1 : index
    %c2_51 = arith.constant 2 : index
    %106 = memref.load %arg3[%c1_50, %c2_51] : memref<4x9xf32, #tpu.memory_space<smem>>
    %107 = vector.broadcast %106 : f32 to vector<8x16xf32>
    %108 = arith.mulf %105, %107 : vector<8x16xf32>
    %109 = arith.addf %104, %108 : vector<8x16xf32>
    %110 = vector.extract_strided_slice %93 {offsets = [1, 0], sizes = [8, 16], strides = [1, 1]} : vector<10x18xf32> to vector<8x16xf32>
    %c1_52 = arith.constant 1 : index
    %c3_53 = arith.constant 3 : index
    %111 = memref.load %arg3[%c1_52, %c3_53] : memref<4x9xf32, #tpu.memory_space<smem>>
    %112 = vector.broadcast %111 : f32 to vector<8x16xf32>
    %113 = arith.mulf %110, %112 : vector<8x16xf32>
    %114 = arith.addf %109, %113 : vector<8x16xf32>
    %115 = vector.extract_strided_slice %93 {offsets = [1, 1], sizes = [8, 16], strides = [1, 1]} : vector<10x18xf32> to vector<8x16xf32>
    %c1_54 = arith.constant 1 : index
    %c4_55 = arith.constant 4 : index
    %116 = memref.load %arg3[%c1_54, %c4_55] : memref<4x9xf32, #tpu.memory_space<smem>>
    %117 = vector.broadcast %116 : f32 to vector<8x16xf32>
    %118 = arith.mulf %115, %117 : vector<8x16xf32>
    %119 = arith.addf %114, %118 : vector<8x16xf32>
    %120 = vector.extract_strided_slice %93 {offsets = [1, 2], sizes = [8, 16], strides = [1, 1]} : vector<10x18xf32> to vector<8x16xf32>
    %c1_56 = arith.constant 1 : index
    %c5_57 = arith.constant 5 : index
    %121 = memref.load %arg3[%c1_56, %c5_57] : memref<4x9xf32, #tpu.memory_space<smem>>
    %122 = vector.broadcast %121 : f32 to vector<8x16xf32>
    %123 = arith.mulf %120, %122 : vector<8x16xf32>
    %124 = arith.addf %119, %123 : vector<8x16xf32>
    %125 = vector.extract_strided_slice %93 {offsets = [2, 0], sizes = [8, 16], strides = [1, 1]} : vector<10x18xf32> to vector<8x16xf32>
    %c1_58 = arith.constant 1 : index
    %c6_59 = arith.constant 6 : index
    %126 = memref.load %arg3[%c1_58, %c6_59] : memref<4x9xf32, #tpu.memory_space<smem>>
    %127 = vector.broadcast %126 : f32 to vector<8x16xf32>
    %128 = arith.mulf %125, %127 : vector<8x16xf32>
    %129 = arith.addf %124, %128 : vector<8x16xf32>
    %130 = vector.extract_strided_slice %93 {offsets = [2, 1], sizes = [8, 16], strides = [1, 1]} : vector<10x18xf32> to vector<8x16xf32>
    %c1_60 = arith.constant 1 : index
    %c7_61 = arith.constant 7 : index
    %131 = memref.load %arg3[%c1_60, %c7_61] : memref<4x9xf32, #tpu.memory_space<smem>>
    %132 = vector.broadcast %131 : f32 to vector<8x16xf32>
    %133 = arith.mulf %130, %132 : vector<8x16xf32>
    %134 = arith.addf %129, %133 : vector<8x16xf32>
    %135 = vector.extract_strided_slice %93 {offsets = [2, 2], sizes = [8, 16], strides = [1, 1]} : vector<10x18xf32> to vector<8x16xf32>
    %c1_62 = arith.constant 1 : index
    %c8_63 = arith.constant 8 : index
    %136 = memref.load %arg3[%c1_62, %c8_63] : memref<4x9xf32, #tpu.memory_space<smem>>
    %137 = vector.broadcast %136 : f32 to vector<8x16xf32>
    %138 = arith.mulf %135, %137 : vector<8x16xf32>
    %139 = arith.addf %134, %138 : vector<8x16xf32>
    %c0_64 = arith.constant 0 : index
    %c1_65 = arith.constant 1 : index
    %140 = memref.load %arg4[%c0_64, %c1_65] : memref<8x4xf32, #tpu.memory_space<smem>>
    %141 = vector.broadcast %140 : f32 to vector<8x16xf32>
    %142 = arith.mulf %139, %141 : vector<8x16xf32>
    %143 = arith.addf %61, %142 : vector<8x16xf32>
    %c1_66 = arith.constant 1 : index
    %c1_67 = arith.constant 1 : index
    %144 = memref.load %arg4[%c1_66, %c1_67] : memref<8x4xf32, #tpu.memory_space<smem>>
    %145 = vector.broadcast %144 : f32 to vector<8x16xf32>
    %146 = arith.mulf %139, %145 : vector<8x16xf32>
    %147 = arith.addf %65, %146 : vector<8x16xf32>
    %c2_68 = arith.constant 2 : index
    %c1_69 = arith.constant 1 : index
    %148 = memref.load %arg4[%c2_68, %c1_69] : memref<8x4xf32, #tpu.memory_space<smem>>
    %149 = vector.broadcast %148 : f32 to vector<8x16xf32>
    %150 = arith.mulf %139, %149 : vector<8x16xf32>
    %151 = arith.addf %69, %150 : vector<8x16xf32>
    %c3_70 = arith.constant 3 : index
    %c1_71 = arith.constant 1 : index
    %152 = memref.load %arg4[%c3_70, %c1_71] : memref<8x4xf32, #tpu.memory_space<smem>>
    %153 = vector.broadcast %152 : f32 to vector<8x16xf32>
    %154 = arith.mulf %139, %153 : vector<8x16xf32>
    %155 = arith.addf %73, %154 : vector<8x16xf32>
    %c4_72 = arith.constant 4 : index
    %c1_73 = arith.constant 1 : index
    %156 = memref.load %arg4[%c4_72, %c1_73] : memref<8x4xf32, #tpu.memory_space<smem>>
    %157 = vector.broadcast %156 : f32 to vector<8x16xf32>
    %158 = arith.mulf %139, %157 : vector<8x16xf32>
    %159 = arith.addf %77, %158 : vector<8x16xf32>
    %c5_74 = arith.constant 5 : index
    %c1_75 = arith.constant 1 : index
    %160 = memref.load %arg4[%c5_74, %c1_75] : memref<8x4xf32, #tpu.memory_space<smem>>
    %161 = vector.broadcast %160 : f32 to vector<8x16xf32>
    %162 = arith.mulf %139, %161 : vector<8x16xf32>
    %163 = arith.addf %81, %162 : vector<8x16xf32>
    %c6_76 = arith.constant 6 : index
    %c1_77 = arith.constant 1 : index
    %164 = memref.load %arg4[%c6_76, %c1_77] : memref<8x4xf32, #tpu.memory_space<smem>>
    %165 = vector.broadcast %164 : f32 to vector<8x16xf32>
    %166 = arith.mulf %139, %165 : vector<8x16xf32>
    %167 = arith.addf %85, %166 : vector<8x16xf32>
    %c7_78 = arith.constant 7 : index
    %c1_79 = arith.constant 1 : index
    %168 = memref.load %arg4[%c7_78, %c1_79] : memref<8x4xf32, #tpu.memory_space<smem>>
    %169 = vector.broadcast %168 : f32 to vector<8x16xf32>
    %170 = arith.mulf %139, %169 : vector<8x16xf32>
    %171 = arith.addf %89, %170 : vector<8x16xf32>
    %c0_80 = arith.constant 0 : index
    %c0_81 = arith.constant 0 : index
    %c2_82 = arith.constant 2 : index
    %c0_83 = arith.constant 0 : index
    %c0_84 = arith.constant 0 : index
    %172 = vector.load %arg2[%c0_80, %c0_81, %c2_82, %c0_83, %c0_84] : memref<1x1x4x10x18xf32, #tpu.memory_space<vmem>>, vector<1x1x1x10x18xf32>
    %173 = vector.shape_cast %172 : vector<1x1x1x10x18xf32> to vector<10x18xf32>
    %cst_85 = arith.constant 0.000000e+00 : f32
    %174 = vector.broadcast %cst_85 : f32 to vector<10x18xf32>
    %175 = arith.maximumf %173, %174 : vector<10x18xf32>
    %cst_86 = arith.constant 0.000000e+00 : f32
    %176 = vector.broadcast %cst_86 : f32 to vector<8x16xf32>
    %177 = vector.extract_strided_slice %175 {offsets = [0, 0], sizes = [8, 16], strides = [1, 1]} : vector<10x18xf32> to vector<8x16xf32>
    %c2_87 = arith.constant 2 : index
    %c0_88 = arith.constant 0 : index
    %178 = memref.load %arg3[%c2_87, %c0_88] : memref<4x9xf32, #tpu.memory_space<smem>>
    %179 = vector.broadcast %178 : f32 to vector<8x16xf32>
    %180 = arith.mulf %177, %179 : vector<8x16xf32>
    %181 = arith.addf %176, %180 : vector<8x16xf32>
    %182 = vector.extract_strided_slice %175 {offsets = [0, 1], sizes = [8, 16], strides = [1, 1]} : vector<10x18xf32> to vector<8x16xf32>
    %c2_89 = arith.constant 2 : index
    %c1_90 = arith.constant 1 : index
    %183 = memref.load %arg3[%c2_89, %c1_90] : memref<4x9xf32, #tpu.memory_space<smem>>
    %184 = vector.broadcast %183 : f32 to vector<8x16xf32>
    %185 = arith.mulf %182, %184 : vector<8x16xf32>
    %186 = arith.addf %181, %185 : vector<8x16xf32>
    %187 = vector.extract_strided_slice %175 {offsets = [0, 2], sizes = [8, 16], strides = [1, 1]} : vector<10x18xf32> to vector<8x16xf32>
    %c2_91 = arith.constant 2 : index
    %c2_92 = arith.constant 2 : index
    %188 = memref.load %arg3[%c2_91, %c2_92] : memref<4x9xf32, #tpu.memory_space<smem>>
    %189 = vector.broadcast %188 : f32 to vector<8x16xf32>
    %190 = arith.mulf %187, %189 : vector<8x16xf32>
    %191 = arith.addf %186, %190 : vector<8x16xf32>
    %192 = vector.extract_strided_slice %175 {offsets = [1, 0], sizes = [8, 16], strides = [1, 1]} : vector<10x18xf32> to vector<8x16xf32>
    %c2_93 = arith.constant 2 : index
    %c3_94 = arith.constant 3 : index
    %193 = memref.load %arg3[%c2_93, %c3_94] : memref<4x9xf32, #tpu.memory_space<smem>>
    %194 = vector.broadcast %193 : f32 to vector<8x16xf32>
    %195 = arith.mulf %192, %194 : vector<8x16xf32>
    %196 = arith.addf %191, %195 : vector<8x16xf32>
    %197 = vector.extract_strided_slice %175 {offsets = [1, 1], sizes = [8, 16], strides = [1, 1]} : vector<10x18xf32> to vector<8x16xf32>
    %c2_95 = arith.constant 2 : index
    %c4_96 = arith.constant 4 : index
    %198 = memref.load %arg3[%c2_95, %c4_96] : memref<4x9xf32, #tpu.memory_space<smem>>
    %199 = vector.broadcast %198 : f32 to vector<8x16xf32>
    %200 = arith.mulf %197, %199 : vector<8x16xf32>
    %201 = arith.addf %196, %200 : vector<8x16xf32>
    %202 = vector.extract_strided_slice %175 {offsets = [1, 2], sizes = [8, 16], strides = [1, 1]} : vector<10x18xf32> to vector<8x16xf32>
    %c2_97 = arith.constant 2 : index
    %c5_98 = arith.constant 5 : index
    %203 = memref.load %arg3[%c2_97, %c5_98] : memref<4x9xf32, #tpu.memory_space<smem>>
    %204 = vector.broadcast %203 : f32 to vector<8x16xf32>
    %205 = arith.mulf %202, %204 : vector<8x16xf32>
    %206 = arith.addf %201, %205 : vector<8x16xf32>
    %207 = vector.extract_strided_slice %175 {offsets = [2, 0], sizes = [8, 16], strides = [1, 1]} : vector<10x18xf32> to vector<8x16xf32>
    %c2_99 = arith.constant 2 : index
    %c6_100 = arith.constant 6 : index
    %208 = memref.load %arg3[%c2_99, %c6_100] : memref<4x9xf32, #tpu.memory_space<smem>>
    %209 = vector.broadcast %208 : f32 to vector<8x16xf32>
    %210 = arith.mulf %207, %209 : vector<8x16xf32>
    %211 = arith.addf %206, %210 : vector<8x16xf32>
    %212 = vector.extract_strided_slice %175 {offsets = [2, 1], sizes = [8, 16], strides = [1, 1]} : vector<10x18xf32> to vector<8x16xf32>
    %c2_101 = arith.constant 2 : index
    %c7_102 = arith.constant 7 : index
    %213 = memref.load %arg3[%c2_101, %c7_102] : memref<4x9xf32, #tpu.memory_space<smem>>
    %214 = vector.broadcast %213 : f32 to vector<8x16xf32>
    %215 = arith.mulf %212, %214 : vector<8x16xf32>
    %216 = arith.addf %211, %215 : vector<8x16xf32>
    %217 = vector.extract_strided_slice %175 {offsets = [2, 2], sizes = [8, 16], strides = [1, 1]} : vector<10x18xf32> to vector<8x16xf32>
    %c2_103 = arith.constant 2 : index
    %c8_104 = arith.constant 8 : index
    %218 = memref.load %arg3[%c2_103, %c8_104] : memref<4x9xf32, #tpu.memory_space<smem>>
    %219 = vector.broadcast %218 : f32 to vector<8x16xf32>
    %220 = arith.mulf %217, %219 : vector<8x16xf32>
    %221 = arith.addf %216, %220 : vector<8x16xf32>
    %c0_105 = arith.constant 0 : index
    %c2_106 = arith.constant 2 : index
    %222 = memref.load %arg4[%c0_105, %c2_106] : memref<8x4xf32, #tpu.memory_space<smem>>
    %223 = vector.broadcast %222 : f32 to vector<8x16xf32>
    %224 = arith.mulf %221, %223 : vector<8x16xf32>
    %225 = arith.addf %143, %224 : vector<8x16xf32>
    %c1_107 = arith.constant 1 : index
    %c2_108 = arith.constant 2 : index
    %226 = memref.load %arg4[%c1_107, %c2_108] : memref<8x4xf32, #tpu.memory_space<smem>>
    %227 = vector.broadcast %226 : f32 to vector<8x16xf32>
    %228 = arith.mulf %221, %227 : vector<8x16xf32>
    %229 = arith.addf %147, %228 : vector<8x16xf32>
    %c2_109 = arith.constant 2 : index
    %c2_110 = arith.constant 2 : index
    %230 = memref.load %arg4[%c2_109, %c2_110] : memref<8x4xf32, #tpu.memory_space<smem>>
    %231 = vector.broadcast %230 : f32 to vector<8x16xf32>
    %232 = arith.mulf %221, %231 : vector<8x16xf32>
    %233 = arith.addf %151, %232 : vector<8x16xf32>
    %c3_111 = arith.constant 3 : index
    %c2_112 = arith.constant 2 : index
    %234 = memref.load %arg4[%c3_111, %c2_112] : memref<8x4xf32, #tpu.memory_space<smem>>
    %235 = vector.broadcast %234 : f32 to vector<8x16xf32>
    %236 = arith.mulf %221, %235 : vector<8x16xf32>
    %237 = arith.addf %155, %236 : vector<8x16xf32>
    %c4_113 = arith.constant 4 : index
    %c2_114 = arith.constant 2 : index
    %238 = memref.load %arg4[%c4_113, %c2_114] : memref<8x4xf32, #tpu.memory_space<smem>>
    %239 = vector.broadcast %238 : f32 to vector<8x16xf32>
    %240 = arith.mulf %221, %239 : vector<8x16xf32>
    %241 = arith.addf %159, %240 : vector<8x16xf32>
    %c5_115 = arith.constant 5 : index
    %c2_116 = arith.constant 2 : index
    %242 = memref.load %arg4[%c5_115, %c2_116] : memref<8x4xf32, #tpu.memory_space<smem>>
    %243 = vector.broadcast %242 : f32 to vector<8x16xf32>
    %244 = arith.mulf %221, %243 : vector<8x16xf32>
    %245 = arith.addf %163, %244 : vector<8x16xf32>
    %c6_117 = arith.constant 6 : index
    %c2_118 = arith.constant 2 : index
    %246 = memref.load %arg4[%c6_117, %c2_118] : memref<8x4xf32, #tpu.memory_space<smem>>
    %247 = vector.broadcast %246 : f32 to vector<8x16xf32>
    %248 = arith.mulf %221, %247 : vector<8x16xf32>
    %249 = arith.addf %167, %248 : vector<8x16xf32>
    %c7_119 = arith.constant 7 : index
    %c2_120 = arith.constant 2 : index
    %250 = memref.load %arg4[%c7_119, %c2_120] : memref<8x4xf32, #tpu.memory_space<smem>>
    %251 = vector.broadcast %250 : f32 to vector<8x16xf32>
    %252 = arith.mulf %221, %251 : vector<8x16xf32>
    %253 = arith.addf %171, %252 : vector<8x16xf32>
    %c0_121 = arith.constant 0 : index
    %c0_122 = arith.constant 0 : index
    %c3_123 = arith.constant 3 : index
    %c0_124 = arith.constant 0 : index
    %c0_125 = arith.constant 0 : index
    %254 = vector.load %arg2[%c0_121, %c0_122, %c3_123, %c0_124, %c0_125] : memref<1x1x4x10x18xf32, #tpu.memory_space<vmem>>, vector<1x1x1x10x18xf32>
    %255 = vector.shape_cast %254 : vector<1x1x1x10x18xf32> to vector<10x18xf32>
    %cst_126 = arith.constant 0.000000e+00 : f32
    %256 = vector.broadcast %cst_126 : f32 to vector<10x18xf32>
    %257 = arith.maximumf %255, %256 : vector<10x18xf32>
    %cst_127 = arith.constant 0.000000e+00 : f32
    %258 = vector.broadcast %cst_127 : f32 to vector<8x16xf32>
    %259 = vector.extract_strided_slice %257 {offsets = [0, 0], sizes = [8, 16], strides = [1, 1]} : vector<10x18xf32> to vector<8x16xf32>
    %c3_128 = arith.constant 3 : index
    %c0_129 = arith.constant 0 : index
    %260 = memref.load %arg3[%c3_128, %c0_129] : memref<4x9xf32, #tpu.memory_space<smem>>
    %261 = vector.broadcast %260 : f32 to vector<8x16xf32>
    %262 = arith.mulf %259, %261 : vector<8x16xf32>
    %263 = arith.addf %258, %262 : vector<8x16xf32>
    %264 = vector.extract_strided_slice %257 {offsets = [0, 1], sizes = [8, 16], strides = [1, 1]} : vector<10x18xf32> to vector<8x16xf32>
    %c3_130 = arith.constant 3 : index
    %c1_131 = arith.constant 1 : index
    %265 = memref.load %arg3[%c3_130, %c1_131] : memref<4x9xf32, #tpu.memory_space<smem>>
    %266 = vector.broadcast %265 : f32 to vector<8x16xf32>
    %267 = arith.mulf %264, %266 : vector<8x16xf32>
    %268 = arith.addf %263, %267 : vector<8x16xf32>
    %269 = vector.extract_strided_slice %257 {offsets = [0, 2], sizes = [8, 16], strides = [1, 1]} : vector<10x18xf32> to vector<8x16xf32>
    %c3_132 = arith.constant 3 : index
    %c2_133 = arith.constant 2 : index
    %270 = memref.load %arg3[%c3_132, %c2_133] : memref<4x9xf32, #tpu.memory_space<smem>>
    %271 = vector.broadcast %270 : f32 to vector<8x16xf32>
    %272 = arith.mulf %269, %271 : vector<8x16xf32>
    %273 = arith.addf %268, %272 : vector<8x16xf32>
    %274 = vector.extract_strided_slice %257 {offsets = [1, 0], sizes = [8, 16], strides = [1, 1]} : vector<10x18xf32> to vector<8x16xf32>
    %c3_134 = arith.constant 3 : index
    %c3_135 = arith.constant 3 : index
    %275 = memref.load %arg3[%c3_134, %c3_135] : memref<4x9xf32, #tpu.memory_space<smem>>
    %276 = vector.broadcast %275 : f32 to vector<8x16xf32>
    %277 = arith.mulf %274, %276 : vector<8x16xf32>
    %278 = arith.addf %273, %277 : vector<8x16xf32>
    %279 = vector.extract_strided_slice %257 {offsets = [1, 1], sizes = [8, 16], strides = [1, 1]} : vector<10x18xf32> to vector<8x16xf32>
    %c3_136 = arith.constant 3 : index
    %c4_137 = arith.constant 4 : index
    %280 = memref.load %arg3[%c3_136, %c4_137] : memref<4x9xf32, #tpu.memory_space<smem>>
    %281 = vector.broadcast %280 : f32 to vector<8x16xf32>
    %282 = arith.mulf %279, %281 : vector<8x16xf32>
    %283 = arith.addf %278, %282 : vector<8x16xf32>
    %284 = vector.extract_strided_slice %257 {offsets = [1, 2], sizes = [8, 16], strides = [1, 1]} : vector<10x18xf32> to vector<8x16xf32>
    %c3_138 = arith.constant 3 : index
    %c5_139 = arith.constant 5 : index
    %285 = memref.load %arg3[%c3_138, %c5_139] : memref<4x9xf32, #tpu.memory_space<smem>>
    %286 = vector.broadcast %285 : f32 to vector<8x16xf32>
    %287 = arith.mulf %284, %286 : vector<8x16xf32>
    %288 = arith.addf %283, %287 : vector<8x16xf32>
    %289 = vector.extract_strided_slice %257 {offsets = [2, 0], sizes = [8, 16], strides = [1, 1]} : vector<10x18xf32> to vector<8x16xf32>
    %c3_140 = arith.constant 3 : index
    %c6_141 = arith.constant 6 : index
    %290 = memref.load %arg3[%c3_140, %c6_141] : memref<4x9xf32, #tpu.memory_space<smem>>
    %291 = vector.broadcast %290 : f32 to vector<8x16xf32>
    %292 = arith.mulf %289, %291 : vector<8x16xf32>
    %293 = arith.addf %288, %292 : vector<8x16xf32>
    %294 = vector.extract_strided_slice %257 {offsets = [2, 1], sizes = [8, 16], strides = [1, 1]} : vector<10x18xf32> to vector<8x16xf32>
    %c3_142 = arith.constant 3 : index
    %c7_143 = arith.constant 7 : index
    %295 = memref.load %arg3[%c3_142, %c7_143] : memref<4x9xf32, #tpu.memory_space<smem>>
    %296 = vector.broadcast %295 : f32 to vector<8x16xf32>
    %297 = arith.mulf %294, %296 : vector<8x16xf32>
    %298 = arith.addf %293, %297 : vector<8x16xf32>
    %299 = vector.extract_strided_slice %257 {offsets = [2, 2], sizes = [8, 16], strides = [1, 1]} : vector<10x18xf32> to vector<8x16xf32>
    %c3_144 = arith.constant 3 : index
    %c8_145 = arith.constant 8 : index
    %300 = memref.load %arg3[%c3_144, %c8_145] : memref<4x9xf32, #tpu.memory_space<smem>>
    %301 = vector.broadcast %300 : f32 to vector<8x16xf32>
    %302 = arith.mulf %299, %301 : vector<8x16xf32>
    %303 = arith.addf %298, %302 : vector<8x16xf32>
    %c0_146 = arith.constant 0 : index
    %c3_147 = arith.constant 3 : index
    %304 = memref.load %arg4[%c0_146, %c3_147] : memref<8x4xf32, #tpu.memory_space<smem>>
    %305 = vector.broadcast %304 : f32 to vector<8x16xf32>
    %306 = arith.mulf %303, %305 : vector<8x16xf32>
    %307 = arith.addf %225, %306 : vector<8x16xf32>
    %c1_148 = arith.constant 1 : index
    %c3_149 = arith.constant 3 : index
    %308 = memref.load %arg4[%c1_148, %c3_149] : memref<8x4xf32, #tpu.memory_space<smem>>
    %309 = vector.broadcast %308 : f32 to vector<8x16xf32>
    %310 = arith.mulf %303, %309 : vector<8x16xf32>
    %311 = arith.addf %229, %310 : vector<8x16xf32>
    %c2_150 = arith.constant 2 : index
    %c3_151 = arith.constant 3 : index
    %312 = memref.load %arg4[%c2_150, %c3_151] : memref<8x4xf32, #tpu.memory_space<smem>>
    %313 = vector.broadcast %312 : f32 to vector<8x16xf32>
    %314 = arith.mulf %303, %313 : vector<8x16xf32>
    %315 = arith.addf %233, %314 : vector<8x16xf32>
    %c3_152 = arith.constant 3 : index
    %c3_153 = arith.constant 3 : index
    %316 = memref.load %arg4[%c3_152, %c3_153] : memref<8x4xf32, #tpu.memory_space<smem>>
    %317 = vector.broadcast %316 : f32 to vector<8x16xf32>
    %318 = arith.mulf %303, %317 : vector<8x16xf32>
    %319 = arith.addf %237, %318 : vector<8x16xf32>
    %c4_154 = arith.constant 4 : index
    %c3_155 = arith.constant 3 : index
    %320 = memref.load %arg4[%c4_154, %c3_155] : memref<8x4xf32, #tpu.memory_space<smem>>
    %321 = vector.broadcast %320 : f32 to vector<8x16xf32>
    %322 = arith.mulf %303, %321 : vector<8x16xf32>
    %323 = arith.addf %241, %322 : vector<8x16xf32>
    %c5_156 = arith.constant 5 : index
    %c3_157 = arith.constant 3 : index
    %324 = memref.load %arg4[%c5_156, %c3_157] : memref<8x4xf32, #tpu.memory_space<smem>>
    %325 = vector.broadcast %324 : f32 to vector<8x16xf32>
    %326 = arith.mulf %303, %325 : vector<8x16xf32>
    %327 = arith.addf %245, %326 : vector<8x16xf32>
    %c6_158 = arith.constant 6 : index
    %c3_159 = arith.constant 3 : index
    %328 = memref.load %arg4[%c6_158, %c3_159] : memref<8x4xf32, #tpu.memory_space<smem>>
    %329 = vector.broadcast %328 : f32 to vector<8x16xf32>
    %330 = arith.mulf %303, %329 : vector<8x16xf32>
    %331 = arith.addf %249, %330 : vector<8x16xf32>
    %c7_160 = arith.constant 7 : index
    %c3_161 = arith.constant 3 : index
    %332 = memref.load %arg4[%c7_160, %c3_161] : memref<8x4xf32, #tpu.memory_space<smem>>
    %333 = vector.broadcast %332 : f32 to vector<8x16xf32>
    %334 = arith.mulf %303, %333 : vector<8x16xf32>
    %335 = arith.addf %253, %334 : vector<8x16xf32>
    %c0_162 = arith.constant 0 : index
    %c0_163 = arith.constant 0 : index
    %c0_164 = arith.constant 0 : index
    %c0_165 = arith.constant 0 : index
    %336 = vector.load %arg5[%c0_162, %c0_163, %c0_164, %c0_165] : memref<1x8x8x16xf32, #tpu.memory_space<vmem>>, vector<1x1x8x16xf32>
    %337 = vector.shape_cast %336 : vector<1x1x8x16xf32> to vector<8x16xf32>
    %338 = vector.shape_cast %307 : vector<8x16xf32> to vector<1x1x8x16xf32>
    tpu.vector_store %arg5[%c0_162, %c0_163, %c0_164, %c0_165], %338 {strides = array<i32>} : memref<1x8x8x16xf32, #tpu.memory_space<vmem>>, vector<1x1x8x16xf32>,
    %cst_166 = arith.constant dense<0.000000e+00> : vector<16xf32>
    %339 = vector.multi_reduction <add>, %307, %cst_166 [0] : vector<8x16xf32> to vector<16xf32>
    %340 = vector.shape_cast %339 : vector<16xf32> to vector<1x16xf32>
    %341 = arith.mulf %307, %307 : vector<8x16xf32>
    %cst_167 = arith.constant dense<0.000000e+00> : vector<16xf32>
    %342 = vector.multi_reduction <add>, %341, %cst_167 [0] : vector<8x16xf32> to vector<16xf32>
    %343 = vector.shape_cast %342 : vector<16xf32> to vector<1x16xf32>
    %c0_168 = arith.constant 0 : index
    %c1_169 = arith.constant 1 : index
    %c0_170 = arith.constant 0 : index
    %c0_171 = arith.constant 0 : index
    %344 = vector.load %arg5[%c0_168, %c1_169, %c0_170, %c0_171] : memref<1x8x8x16xf32, #tpu.memory_space<vmem>>, vector<1x1x8x16xf32>
    %345 = vector.shape_cast %344 : vector<1x1x8x16xf32> to vector<8x16xf32>
    %346 = vector.shape_cast %311 : vector<8x16xf32> to vector<1x1x8x16xf32>
    tpu.vector_store %arg5[%c0_168, %c1_169, %c0_170, %c0_171], %346 {strides = array<i32>} : memref<1x8x8x16xf32, #tpu.memory_space<vmem>>, vector<1x1x8x16xf32>,
    %cst_172 = arith.constant dense<0.000000e+00> : vector<16xf32>
    %347 = vector.multi_reduction <add>, %311, %cst_172 [0] : vector<8x16xf32> to vector<16xf32>
    %348 = vector.shape_cast %347 : vector<16xf32> to vector<1x16xf32>
    %349 = arith.mulf %311, %311 : vector<8x16xf32>
    %cst_173 = arith.constant dense<0.000000e+00> : vector<16xf32>
    %350 = vector.multi_reduction <add>, %349, %cst_173 [0] : vector<8x16xf32> to vector<16xf32>
    %351 = vector.shape_cast %350 : vector<16xf32> to vector<1x16xf32>
    %c0_174 = arith.constant 0 : index
    %c2_175 = arith.constant 2 : index
    %c0_176 = arith.constant 0 : index
    %c0_177 = arith.constant 0 : index
    %352 = vector.load %arg5[%c0_174, %c2_175, %c0_176, %c0_177] : memref<1x8x8x16xf32, #tpu.memory_space<vmem>>, vector<1x1x8x16xf32>
    %353 = vector.shape_cast %352 : vector<1x1x8x16xf32> to vector<8x16xf32>
    %354 = vector.shape_cast %315 : vector<8x16xf32> to vector<1x1x8x16xf32>
    tpu.vector_store %arg5[%c0_174, %c2_175, %c0_176, %c0_177], %354 {strides = array<i32>} : memref<1x8x8x16xf32, #tpu.memory_space<vmem>>, vector<1x1x8x16xf32>,
    %cst_178 = arith.constant dense<0.000000e+00> : vector<16xf32>
    %355 = vector.multi_reduction <add>, %315, %cst_178 [0] : vector<8x16xf32> to vector<16xf32>
    %356 = vector.shape_cast %355 : vector<16xf32> to vector<1x16xf32>
    %357 = arith.mulf %315, %315 : vector<8x16xf32>
    %cst_179 = arith.constant dense<0.000000e+00> : vector<16xf32>
    %358 = vector.multi_reduction <add>, %357, %cst_179 [0] : vector<8x16xf32> to vector<16xf32>
    %359 = vector.shape_cast %358 : vector<16xf32> to vector<1x16xf32>
    %c0_180 = arith.constant 0 : index
    %c3_181 = arith.constant 3 : index
    %c0_182 = arith.constant 0 : index
    %c0_183 = arith.constant 0 : index
    %360 = vector.load %arg5[%c0_180, %c3_181, %c0_182, %c0_183] : memref<1x8x8x16xf32, #tpu.memory_space<vmem>>, vector<1x1x8x16xf32>
    %361 = vector.shape_cast %360 : vector<1x1x8x16xf32> to vector<8x16xf32>
    %362 = vector.shape_cast %319 : vector<8x16xf32> to vector<1x1x8x16xf32>
    tpu.vector_store %arg5[%c0_180, %c3_181, %c0_182, %c0_183], %362 {strides = array<i32>} : memref<1x8x8x16xf32, #tpu.memory_space<vmem>>, vector<1x1x8x16xf32>,
    %cst_184 = arith.constant dense<0.000000e+00> : vector<16xf32>
    %363 = vector.multi_reduction <add>, %319, %cst_184 [0] : vector<8x16xf32> to vector<16xf32>
    %364 = vector.shape_cast %363 : vector<16xf32> to vector<1x16xf32>
    %365 = arith.mulf %319, %319 : vector<8x16xf32>
    %cst_185 = arith.constant dense<0.000000e+00> : vector<16xf32>
    %366 = vector.multi_reduction <add>, %365, %cst_185 [0] : vector<8x16xf32> to vector<16xf32>
    %367 = vector.shape_cast %366 : vector<16xf32> to vector<1x16xf32>
    %c0_186 = arith.constant 0 : index
    %c4_187 = arith.constant 4 : index
    %c0_188 = arith.constant 0 : index
    %c0_189 = arith.constant 0 : index
    %368 = vector.load %arg5[%c0_186, %c4_187, %c0_188, %c0_189] : memref<1x8x8x16xf32, #tpu.memory_space<vmem>>, vector<1x1x8x16xf32>
    %369 = vector.shape_cast %368 : vector<1x1x8x16xf32> to vector<8x16xf32>
    %370 = vector.shape_cast %323 : vector<8x16xf32> to vector<1x1x8x16xf32>
    tpu.vector_store %arg5[%c0_186, %c4_187, %c0_188, %c0_189], %370 {strides = array<i32>} : memref<1x8x8x16xf32, #tpu.memory_space<vmem>>, vector<1x1x8x16xf32>,
    %cst_190 = arith.constant dense<0.000000e+00> : vector<16xf32>
    %371 = vector.multi_reduction <add>, %323, %cst_190 [0] : vector<8x16xf32> to vector<16xf32>
    %372 = vector.shape_cast %371 : vector<16xf32> to vector<1x16xf32>
    %373 = arith.mulf %323, %323 : vector<8x16xf32>
    %cst_191 = arith.constant dense<0.000000e+00> : vector<16xf32>
    %374 = vector.multi_reduction <add>, %373, %cst_191 [0] : vector<8x16xf32> to vector<16xf32>
    %375 = vector.shape_cast %374 : vector<16xf32> to vector<1x16xf32>
    %c0_192 = arith.constant 0 : index
    %c5_193 = arith.constant 5 : index
    %c0_194 = arith.constant 0 : index
    %c0_195 = arith.constant 0 : index
    %376 = vector.load %arg5[%c0_192, %c5_193, %c0_194, %c0_195] : memref<1x8x8x16xf32, #tpu.memory_space<vmem>>, vector<1x1x8x16xf32>
    %377 = vector.shape_cast %376 : vector<1x1x8x16xf32> to vector<8x16xf32>
    %378 = vector.shape_cast %327 : vector<8x16xf32> to vector<1x1x8x16xf32>
    tpu.vector_store %arg5[%c0_192, %c5_193, %c0_194, %c0_195], %378 {strides = array<i32>} : memref<1x8x8x16xf32, #tpu.memory_space<vmem>>, vector<1x1x8x16xf32>,
    %cst_196 = arith.constant dense<0.000000e+00> : vector<16xf32>
    %379 = vector.multi_reduction <add>, %327, %cst_196 [0] : vector<8x16xf32> to vector<16xf32>
    %380 = vector.shape_cast %379 : vector<16xf32> to vector<1x16xf32>
    %381 = arith.mulf %327, %327 : vector<8x16xf32>
    %cst_197 = arith.constant dense<0.000000e+00> : vector<16xf32>
    %382 = vector.multi_reduction <add>, %381, %cst_197 [0] : vector<8x16xf32> to vector<16xf32>
    %383 = vector.shape_cast %382 : vector<16xf32> to vector<1x16xf32>
    %c0_198 = arith.constant 0 : index
    %c6_199 = arith.constant 6 : index
    %c0_200 = arith.constant 0 : index
    %c0_201 = arith.constant 0 : index
    %384 = vector.load %arg5[%c0_198, %c6_199, %c0_200, %c0_201] : memref<1x8x8x16xf32, #tpu.memory_space<vmem>>, vector<1x1x8x16xf32>
    %385 = vector.shape_cast %384 : vector<1x1x8x16xf32> to vector<8x16xf32>
    %386 = vector.shape_cast %331 : vector<8x16xf32> to vector<1x1x8x16xf32>
    tpu.vector_store %arg5[%c0_198, %c6_199, %c0_200, %c0_201], %386 {strides = array<i32>} : memref<1x8x8x16xf32, #tpu.memory_space<vmem>>, vector<1x1x8x16xf32>,
    %cst_202 = arith.constant dense<0.000000e+00> : vector<16xf32>
    %387 = vector.multi_reduction <add>, %331, %cst_202 [0] : vector<8x16xf32> to vector<16xf32>
    %388 = vector.shape_cast %387 : vector<16xf32> to vector<1x16xf32>
    %389 = arith.mulf %331, %331 : vector<8x16xf32>
    %cst_203 = arith.constant dense<0.000000e+00> : vector<16xf32>
    %390 = vector.multi_reduction <add>, %389, %cst_203 [0] : vector<8x16xf32> to vector<16xf32>
    %391 = vector.shape_cast %390 : vector<16xf32> to vector<1x16xf32>
    %c0_204 = arith.constant 0 : index
    %c7_205 = arith.constant 7 : index
    %c0_206 = arith.constant 0 : index
    %c0_207 = arith.constant 0 : index
    %392 = vector.load %arg5[%c0_204, %c7_205, %c0_206, %c0_207] : memref<1x8x8x16xf32, #tpu.memory_space<vmem>>, vector<1x1x8x16xf32>
    %393 = vector.shape_cast %392 : vector<1x1x8x16xf32> to vector<8x16xf32>
    %394 = vector.shape_cast %335 : vector<8x16xf32> to vector<1x1x8x16xf32>
    tpu.vector_store %arg5[%c0_204, %c7_205, %c0_206, %c0_207], %394 {strides = array<i32>} : memref<1x8x8x16xf32, #tpu.memory_space<vmem>>, vector<1x1x8x16xf32>,
    %cst_208 = arith.constant dense<0.000000e+00> : vector<16xf32>
    %395 = vector.multi_reduction <add>, %335, %cst_208 [0] : vector<8x16xf32> to vector<16xf32>
    %396 = vector.shape_cast %395 : vector<16xf32> to vector<1x16xf32>
    %397 = arith.mulf %335, %335 : vector<8x16xf32>
    %cst_209 = arith.constant dense<0.000000e+00> : vector<16xf32>
    %398 = vector.multi_reduction <add>, %397, %cst_209 [0] : vector<8x16xf32> to vector<16xf32>
    %399 = vector.shape_cast %398 : vector<16xf32> to vector<1x16xf32>
    %400 = tpu.concatenate %340, %348, %356, %364, %372, %380, %388, %396 in 0 : vector<1x16xf32>, vector<1x16xf32>, vector<1x16xf32>, vector<1x16xf32>, vector<1x16xf32>, vector<1x16xf32>, vector<1x16xf32>, vector<1x16xf32> -> vector<8x16xf32>
    %c0_210 = arith.constant 0 : index
    %c0_211 = arith.constant 0 : index
    %c0_212 = arith.constant 0 : index
    %c0_213 = arith.constant 0 : index
    %c0_214 = arith.constant 0 : index
    %401 = vector.load %arg6[%c0_210, %c0_211, %c0_212, %c0_213, %c0_214] : memref<1x1x2x8x16xf32, #tpu.memory_space<vmem>>, vector<1x1x1x8x16xf32>
    %402 = vector.shape_cast %401 : vector<1x1x1x8x16xf32> to vector<8x16xf32>
    %403 = vector.shape_cast %400 : vector<8x16xf32> to vector<1x1x1x8x16xf32>
    tpu.vector_store %arg6[%c0_210, %c0_211, %c0_212, %c0_213, %c0_214], %403 {strides = array<i32>} : memref<1x1x2x8x16xf32, #tpu.memory_space<vmem>>, vector<1x1x1x8x16xf32>,
    %404 = tpu.concatenate %343, %351, %359, %367, %375, %383, %391, %399 in 0 : vector<1x16xf32>, vector<1x16xf32>, vector<1x16xf32>, vector<1x16xf32>, vector<1x16xf32>, vector<1x16xf32>, vector<1x16xf32>, vector<1x16xf32> -> vector<8x16xf32>
    %c0_215 = arith.constant 0 : index
    %c0_216 = arith.constant 0 : index
    %c1_217 = arith.constant 1 : index
    %c0_218 = arith.constant 0 : index
    %c0_219 = arith.constant 0 : index
    %405 = vector.load %arg6[%c0_215, %c0_216, %c1_217, %c0_218, %c0_219] : memref<1x1x2x8x16xf32, #tpu.memory_space<vmem>>, vector<1x1x1x8x16xf32>
    %406 = vector.shape_cast %405 : vector<1x1x1x8x16xf32> to vector<8x16xf32>
    %407 = vector.shape_cast %404 : vector<8x16xf32> to vector<1x1x1x8x16xf32>
    tpu.vector_store %arg6[%c0_215, %c0_216, %c1_217, %c0_218, %c0_219], %407 {strides = array<i32>} : memref<1x1x2x8x16xf32, #tpu.memory_space<vmem>>, vector<1x1x1x8x16xf32>,
    return
  }
  func.func @transform_0(%arg0: i32, %arg1: i32) -> (i32, i32, i32, i32, i32) {
    %c0_i32 = arith.constant 0 : i32
    %c0_i32_0 = arith.constant 0 : i32
    %c0_i32_1 = arith.constant 0 : i32
    %c0_i32_2 = arith.constant 0 : i32
    return %arg0, %arg1, %c0_i32, %c0_i32_0, %c0_i32_1 : i32, i32, i32, i32, i32
  }
  func.func @transform_1(%arg0: i32, %arg1: i32) -> (i32, i32) {
    %c0_i32 = arith.constant 0 : i32
    %c0_i32_0 = arith.constant 0 : i32
    %c0_i32_1 = arith.constant 0 : i32
    return %c0_i32, %c0_i32_0 : i32, i32
  }
  func.func @transform_2(%arg0: i32, %arg1: i32) -> (i32, i32) {
    %c0_i32 = arith.constant 0 : i32
    %c0_i32_0 = arith.constant 0 : i32
    %c0_i32_1 = arith.constant 0 : i32
    return %c0_i32, %c0_i32_0 : i32, i32
  }
  func.func @transform_3(%arg0: i32, %arg1: i32) -> (i32, i32, i32, i32) {
    %c0_i32 = arith.constant 0 : i32
    %c0_i32_0 = arith.constant 0 : i32
    %c0_i32_1 = arith.constant 0 : i32
    return %arg0, %c0_i32, %arg1, %c0_i32_0 : i32, i32, i32, i32
  }
  func.func @transform_4(%arg0: i32, %arg1: i32) -> (i32, i32, i32, i32, i32) {
    %c0_i32 = arith.constant 0 : i32
    %c0_i32_0 = arith.constant 0 : i32
    %c0_i32_1 = arith.constant 0 : i32
    %c0_i32_2 = arith.constant 0 : i32
    return %arg0, %arg1, %c0_i32, %c0_i32_0, %c0_i32_1 : i32, i32, i32, i32, i32
  }
}

</mosaic_0001>

<llo_original>
// kernel: tpu_custom_call.1
$region0: #{tpu_custom_call.1}
  #allocation0 [shape = 'u32[]', space=smem, size = 0x4, offset = 0x4, fixed_abs, tag = 'smem constant byte address 0x4 - core index']
  #allocation1 [shape = 'u32[144,128]{1,0:T(1,128)}', space=vmem, size = 0x12000, scoped, tag = 'internal scratch']
  %s0 = inlined_call_operand.vmem [shape: f32[2,2,4,10,18], index: 0, kind: input, shape index: {}]
  %s1 = inlined_call_operand.vmem [shape: f32[4,9], index: 1, kind: input, shape index: {}]
  %s2 = inlined_call_operand.vmem [shape: f32[8,4], index: 2, kind: input, shape index: {}]
  %s3 = inlined_call_operand.hbm [shape: f32[2,8,16,16], index: 3, kind: output, shape index: {0}]
  %s4 = inlined_call_operand.hbm [shape: f32[2,2,2,8,16], index: 4, kind: output, shape index: {1}]
  %5 = xla_tuple %s3, %s4
  %s6 = sld [smem:[#allocation0]]
  $region61: #{tpu_custom_call.1} parent=0
    _
  %s8 = ssub.s32 1, %s6
  %s9 = scalar_select 0, %s8, %s6
  $region1: #{tpu_custom_call.1} parent=0
    #allocation2 [shape = 'u8[2048]{0}', space=smem, size = 0x800, scoped, tag = 'input window, operand 1, single buffered']
    #allocation3 [shape = 's32[2]{0}', space=sflag, size = 0x8, scoped, tag = 'scoped memory for tpu_custom_call.1']
    #allocation4 [shape = 's32[2]{0}', space=sflag, size = 0x8, scoped, tag = 'scoped memory for tpu_custom_call.1']
    #allocation5 [shape = 'u8[4096]{0}', space=smem, size = 0x1000, scoped, tag = 'input window, operand 2, single buffered']
    #allocation6 [shape = 's32[1]{0}', space=sflag, size = 0x4, scoped, tag = 'scoped memory for tpu_custom_call.1']
    #allocation7 [shape = 'u8[65536]{0}', space=vmem, size = 0x10000, scoped, tag = 'output window, operand 0']
    #allocation8 [shape = 'u8[16384]{0}', space=vmem, size = 0x4000, scoped, tag = 'output window, operand 1']
    #allocation9 [shape = 's32[2]{0}', space=sflag, size = 0x8, scoped, tag = 'scoped memory for tpu_custom_call.1']
    %10 = vsyncpa [#allocation4], 0
    %11 = vsyncpa [#allocation6], 0
    %12 = vsyncpa [#allocation3], 0
    %s13 = scalar_lea.sflag [#allocation3], 1
    %14 = vsyncpa %s13, 0
    %15 = vsyncpa [#allocation9], 0
    %s16 = scalar_lea.sflag [#allocation9], 1
    %17 = vsyncpa %s16, 0
    loop: start=0, step=1, limit=6
    $region2: #{tpu_custom_call.1} parent=1 // loop_pre_header
      _
    $region3: #{tpu_custom_call.1} parent=1 // loop_header
      %s19 = sphi 0, %s23
      %p20 = scmp.ge.s32.totalorder %s19, 6
      %s26 = sphi 0, %s38
      %s27 = sphi 0, %s34
      %s28 = sphi 0, %s26
      %s29 = sphi 0, %s27
      %s30 = sphi 0, %s28
      %s31 = sphi 0, %s29
      %s43 = sphi 0, %s45
      %s46 = sphi 0, %s43
      %s47 = sphi 0, %s46
      %s63 = sphi 0, %s47
      %s67 = sphi 0, %s67
      %s69 = sphi 0, %s67
      %s70 = sphi 0, %s69
      %s84 = sphi 0, %s70
      %s88 = sphi 0, %s88
      %s90 = sphi 0, %s88
      %s91 = sphi 0, %s90
      %s105 = sphi 0, %s91
      %s113 = sphi 0, %s115
      %s116 = sphi 0, %s113
      %s117 = sphi 0, %s116
      %s133 = sphi 0, %s117
      %s141 = sphi 0, %s143
      %s144 = sphi 0, %s141
      %s145 = sphi 0, %s144
      %s161 = sphi 0, %s145
    $region4: #{tpu_custom_call.1} parent=1 // loop_header_branch
      %22 = sbr.rel (%p20) target = $region8
    $region5: #{tpu_custom_call.1} parent=1 // loop_body
      %s24 = ssub.s32 %s19, 1
      %s25 = ssub.s32 %s19, 2
      %s32 = sadd.s32 1, %s27
      %p33 = scmp.ge.s32.totalorder %s32, 2
      %s34 = scalar_select %p33, 0, %s32
      %s35 = sadd.s32 1, %s26
      %s36 = scalar_select %p33, %s35, %s26
      %p37 = scmp.ge.s32.totalorder %s36, 2
      %s38 = scalar_select %p37, 0, %s36
      %s39 = ssub.s32 %s26, %s38
      %s40 = ssub.s32 %s27, %s34
      %s41 = sor.u32 %s39, %s40
      %p42 = scmp.eq.s32.totalorder %s41, 0
      %s44 = sadd.s32 %s43, 1
      %s45 = scalar_select %p42, %s43, %s44
      %p48 = pneg %p42
      %p49 = scmp.eq.s32.totalorder %s19, 3
      %p50 = por %p48, %p49
      %p51 = scmp.ne.s32.totalorder %s43, %s46
      %p52 = scmp.eq.s32.totalorder %s19, 0
      %p53 = por %p51, %p52
      %p54 = scmp.ne.s32.totalorder %s43, %s46
      %p55 = scmp.eq.s32.totalorder %s24, 3
      %p56 = por %p54, %p55
      %p57 = scmp.ne.s32.totalorder %s46, %s47
      %p58 = scmp.eq.s32.totalorder %s24, 0
      %p59 = por %p57, %p58
      %p60 = scmp.ne.s32.totalorder %s46, %s47
      %p61 = scmp.eq.s32.totalorder %s25, 3
      %p62 = por %p60, %p61
      %p64 = scmp.ne.s32.totalorder %s47, %s63
      %p65 = scmp.eq.s32.totalorder %s25, 0
      %p66 = por %p64, %p65
      %s68 = sadd.s32 %s67, 1
      %p71 = scmp.eq.s32.totalorder %s19, 3
      %p72 = scmp.ne.s32.totalorder %s67, %s69
      %p73 = scmp.eq.s32.totalorder %s19, 0
      %p74 = por %p72, %p73
      %p75 = scmp.ne.s32.totalorder %s67, %s69
      %p76 = scmp.eq.s32.totalorder %s24, 3
      %p77 = por %p75, %p76
      %p78 = scmp.ne.s32.totalorder %s69, %s70
      %p79 = scmp.eq.s32.totalorder %s24, 0
      %p80 = por %p78, %p79
      %p81 = scmp.ne.s32.totalorder %s69, %s70
      %p82 = scmp.eq.s32.totalorder %s25, 3
      %p83 = por %p81, %p82
      %p85 = scmp.ne.s32.totalorder %s70, %s84
      %p86 = scmp.eq.s32.totalorder %s25, 0
      %p87 = por %p85, %p86
      %s89 = sadd.s32 %s88, 1
      %p92 = scmp.eq.s32.totalorder %s19, 3
      %p93 = scmp.ne.s32.totalorder %s88, %s90
      %p94 = scmp.eq.s32.totalorder %s19, 0
      %p95 = por %p93, %p94
      %p96 = scmp.ne.s32.totalorder %s88, %s90
      %p97 = scmp.eq.s32.totalorder %s24, 3
      %p98 = por %p96, %p97
      %p99 = scmp.ne.s32.totalorder %s90, %s91
      %p100 = scmp.eq.s32.totalorder %s24, 0
      %p101 = por %p99, %p100
      %p102 = scmp.ne.s32.totalorder %s90, %s91
      %p103 = scmp.eq.s32.totalorder %s25, 3
      %p104 = por %p102, %p103
      %p106 = scmp.ne.s32.totalorder %s91, %s105
      %p107 = scmp.eq.s32.totalorder %s25, 0
      %p108 = por %p106, %p107
      %s109 = ssub.s32 %s26, %s38
      %s110 = ssub.s32 %s27, %s34
      %s111 = sor.u32 %s109, %s110
      %p112 = scmp.eq.s32.totalorder %s111, 0
      %s114 = sadd.s32 %s113, 1
      %s115 = scalar_select %p112, %s113, %s114
      %p118 = pneg %p112
      %p119 = scmp.eq.s32.totalorder %s19, 3
      %p120 = por %p118, %p119
      %p121 = scmp.ne.s32.totalorder %s113, %s116
      %p122 = scmp.eq.s32.totalorder %s19, 0
      %p123 = por %p121, %p122
      %p124 = scmp.ne.s32.totalorder %s113, %s116
      %p125 = scmp.eq.s32.totalorder %s24, 3
      %p126 = por %p124, %p125
      %p127 = scmp.ne.s32.totalorder %s116, %s117
      %p128 = scmp.eq.s32.totalorder %s24, 0
      %p129 = por %p127, %p128
      %p130 = scmp.ne.s32.totalorder %s116, %s117
      %p131 = scmp.eq.s32.totalorder %s25, 3
      %p132 = por %p130, %p131
      %p134 = scmp.ne.s32.totalorder %s117, %s133
      %p135 = scmp.eq.s32.totalorder %s25, 0
      %p136 = por %p134, %p135
      %s137 = ssub.s32 %s26, %s38
      %s138 = ssub.s32 %s27, %s34
      %s139 = sor.u32 %s137, %s138
      %p140 = scmp.eq.s32.totalorder %s139, 0
      %s142 = sadd.s32 %s141, 1
      %s143 = scalar_select %p140, %s141, %s142
      %p146 = pneg %p140
      %p147 = scmp.eq.s32.totalorder %s19, 3
      %p148 = por %p146, %p147
      %p149 = scmp.ne.s32.totalorder %s141, %s144
      %p150 = scmp.eq.s32.totalorder %s19, 0
      %p151 = por %p149, %p150
      %p152 = scmp.ne.s32.totalorder %s141, %s144
      %p153 = scmp.eq.s32.totalorder %s24, 3
      %p154 = por %p152, %p153
      %p155 = scmp.ne.s32.totalorder %s144, %s145
      %p156 = scmp.eq.s32.totalorder %s24, 0
      %p157 = por %p155, %p156
      %p158 = scmp.ne.s32.totalorder %s144, %s145
      %p159 = scmp.eq.s32.totalorder %s25, 3
      %p160 = por %p158, %p159
      %p162 = scmp.ne.s32.totalorder %s145, %s161
      %p163 = scmp.eq.s32.totalorder %s25, 0
      %p164 = por %p162, %p163
      %p165 = scmp.le.s32.totalorder 1, %s19
      %p166 = scmp.lt.s32.totalorder %s19, 5
      %p167 = pnand %p165, %p166
      %p168 = pneg %p167
      // Predicated region
      $region9: #{tpu_custom_call.1} parent=5 // pred_check
        _
      $region10: #{tpu_custom_call.1} parent=5 // pred_check_branch
        %170 = sbr.rel (%p167) target = $region12
      $region11: #{tpu_custom_call.1} parent=5 // pred_region
        %s171 = ssub.s32 %s19, 1
        // Predicated region
        $region13: #{tpu_custom_call.1} parent=11 // pred_check
          %p172 = pneg %p80
        $region14: #{tpu_custom_call.1} parent=11 // pred_check_branch
          %174 = sbr.rel (%p172) target = $region16
        $region15: #{tpu_custom_call.1} parent=11 // pred_region
          %s176 = ssub.s32 64, 64
          %177 = vsyncadd [#allocation4], %s176
          %s179 = sshll.u32 %s1, 4
          %s180 = int_to_ptr.vmem [resolvable:$true] %s179
          %182 = dma.vmem_to_smem %s180, 64, [#allocation2], [#allocation4]
        $region16: #{tpu_custom_call.1} parent=11 // pred_fallthru
          _
        // Predicated region
        $region17: #{tpu_custom_call.1} parent=11 // pred_check
          %p183 = pneg %p101
        $region18: #{tpu_custom_call.1} parent=11 // pred_check_branch
          %185 = sbr.rel (%p183) target = $region20
        $region19: #{tpu_custom_call.1} parent=11 // pred_region
          %s187 = ssub.s32 128, 128
          %188 = vsyncadd [#allocation6], %s187
          %s190 = sshll.u32 %s2, 4
          %s191 = int_to_ptr.vmem [resolvable:$true] %s190
          %193 = dma.vmem_to_smem %s191, 128, [#allocation5], [#allocation6]
        $region20: #{tpu_custom_call.1} parent=11 // pred_fallthru
          _
      $region12: #{tpu_custom_call.1} parent=5 // pred_fallthru
        _
      %p194 = scmp.lt.s32.totalorder %s19, 4
      // Predicated region
      $region21: #{tpu_custom_call.1} parent=5 // pred_check
        %p195 = pneg %p194
      $region22: #{tpu_custom_call.1} parent=5 // pred_check_branch
        %197 = sbr.rel (%p195) target = $region24
      $region23: #{tpu_custom_call.1} parent=5 // pred_region
        // Predicated region
        $region25: #{tpu_custom_call.1} parent=23 // pred_check
          %p198 = pneg %p53
        $region26: #{tpu_custom_call.1} parent=23 // pred_check_branch
          %200 = sbr.rel (%p198) target = $region28
        $region27: #{tpu_custom_call.1} parent=23 // pred_region
          %p201 = scmp.lt.s32.totalorder %s26, 1
          %s202 = scalar_select %p201, %s26, 1
          %p203 = scmp.lt.s32.totalorder %s27, 1
          %s204 = scalar_select %p203, %s27, 1
          %s205 = smul.addr %s204, 8
          %s206 = smul.addr %s202, 16
          %s207 = sadd.s32 %s205, %s206
          %s208 = smul.addr %s207, 8
          %s209 = scalar_lea.vmem %s0, %s208
        $region28: #{tpu_custom_call.1} parent=23 // pred_fallthru
          _
      $region24: #{tpu_custom_call.1} parent=5 // pred_fallthru
        _
      %p210 = scmp.le.s32.totalorder 1, %s19
      %p211 = scmp.lt.s32.totalorder %s19, 5
      %p212 = pnand %p210, %p211
      %p213 = pneg %p212
      // Predicated region
      $region29: #{tpu_custom_call.1} parent=5 // pred_check
        _
      $region30: #{tpu_custom_call.1} parent=5 // pred_check_branch
        %215 = sbr.rel (%p212) target = $region32
      $region31: #{tpu_custom_call.1} parent=5 // pred_region
        %s216 = ssub.s32 %s19, 1
        // Predicated region
        $region33: #{tpu_custom_call.1} parent=31 // pred_check
          %p217 = pneg %p80
        $region34: #{tpu_custom_call.1} parent=31 // pred_check_branch
          %219 = sbr.rel (%p217) target = $region36
        $region35: #{tpu_custom_call.1} parent=31 // pred_region
          %220 = dma.done [#allocation4], 64
        $region36: #{tpu_custom_call.1} parent=31 // pred_fallthru
          _
        // Predicated region
        $region37: #{tpu_custom_call.1} parent=31 // pred_check
          %p221 = pneg %p101
        $region38: #{tpu_custom_call.1} parent=31 // pred_check_branch
          %223 = sbr.rel (%p221) target = $region40
        $region39: #{tpu_custom_call.1} parent=31 // pred_region
          %224 = dma.done [#allocation6], 128
        $region40: #{tpu_custom_call.1} parent=31 // pred_fallthru
          _
        %225 = sfence
        %p226 = scmp.lt.s32.totalorder %s28, 1
        %s227 = scalar_select %p226, %s28, 1
        %p228 = scmp.lt.s32.totalorder %s29, 1
        %s229 = scalar_select %p228, %s29, 1
        %s230 = smul.addr %s229, 8
        %s231 = smul.addr %s227, 16
        %s232 = sadd.s32 %s230, %s231
        %s233 = smul.addr %s232, 8
        %s234 = scalar_lea.vmem %s0, %s233
        %p235 = pneg %p59
        %p236 = pneg %p56
        %p237 = pneg %p80
        %p238 = pneg %p77
        %p239 = pneg %p101
        %p240 = pneg %p98
        %p241 = pneg %p129
        %p242 = pneg %p126
        %s243 = sand.u32 %s116, 1
        %s244 = scalar_lea.sflag [#allocation3], %s243
        %s245 = sand.u32 %s116, 1
        %s246 = smul.addr %s245, 64
        %s247 = scalar_lea.vmem [#allocation7], %s246
        %p248 = pneg %p157
        %p249 = pneg %p154
        %s250 = sand.u32 %s144, 1
        %s251 = scalar_lea.sflag [#allocation9], %s250
        %s252 = sand.u32 %s144, 1
        %s253 = smul.addr %s252, 16
        %s254 = scalar_lea.vmem [#allocation8], %s253
        %p255 = scmp.lt.s32.totalorder %s28, 1
        %s256 = scalar_select %p255, %s28, 1
        %p257 = scmp.lt.s32.totalorder %s29, 1
        %s258 = scalar_select %p257, %s29, 1
        %s259 = smul.addr %s258, 8
        %s260 = smul.addr %s256, 16
        %s261 = sadd.s32 %s259, %s260
        %s262 = smul.addr %s261, 8
        %s263 = scalar_lea.vmem %s0, %s262
        %v264 = vld [vmem:[%s263] sm:$0xff]
        %v265 = vld [vmem:[%s263 + $0x8] sm:$0x3]
        %v266 = vmax.f32 %v264, 0.0
        %v267 = vmax.f32 %v265, 0.0
        %s268 = sld [smem:[#allocation2]]
        %v269 = vstv %s268
        %v270 = vmul.f32 %v266, %v269
        %v271 = vadd.f32 %v270, 0.0
        %s272 = sld [smem:[#allocation2 + $0x1]]
        %v273 = vstv %s272
        %v274 = vmul.f32 %v266, %v273
        %276 = vrot.lane.b32.xlu0 %v274, 127
        %v277 = vpop.permute.xlu0 %276
        %v279 = vadd.f32 %v271, %v277
        %s280 = sld [smem:[#allocation2 + $0x2]]
        %v281 = vstv %s280
        %v282 = vmul.f32 %v266, %v281
        %284 = vrot.lane.b32.xlu0 %v282, 126
        %v285 = vpop.permute.xlu0 %284
        %v287 = vadd.f32 %v279, %v285
        %s288 = sld [smem:[#allocation2 + $0x3]]
        %v289 = vstv %s288
        %v290 = vmul.f32 %v266, %v289
        %v291 = vmul.f32 %v267, %v289
        %vm294 = vcmask 1046528
        %v295 = vrot.slane %v290, 1
        %v296 = vrot.slane %v291, 1
        %v297 = vsel %vm294, %v295, %v296
        %v299 = vadd.f32 %v287, %v297
        %s300 = sld [smem:[#allocation2 + $0x4]]
        %v301 = vstv %s300
        %v302 = vmul.f32 %v266, %v301
        %v303 = vmul.f32 %v267, %v301
        %v306 = vrot.slane %v302, 1
        %v307 = vrot.slane %v303, 1
        %v308 = vsel %vm294, %v306, %v307
        %309 = vrot.lane.b32.xlu0 %v308, 127
        %v310 = vpop.permute.xlu0 %309
        %v312 = vadd.f32 %v299, %v310
        %s313 = sld [smem:[#allocation2 + $0x5]]
        %v314 = vstv %s313
        %v315 = vmul.f32 %v266, %v314
        %v316 = vmul.f32 %v267, %v314
        %v319 = vrot.slane %v315, 1
        %v320 = vrot.slane %v316, 1
        %v321 = vsel %vm294, %v319, %v320
        %322 = vrot.lane.b32.xlu0 %v321, 126
        %v323 = vpop.permute.xlu0 %322
        %v325 = vadd.f32 %v312, %v323
        %s326 = sld [smem:[#allocation2 + $0x6]]
        %v327 = vstv %s326
        %v328 = vmul.f32 %v266, %v327
        %v329 = vmul.f32 %v267, %v327
        %vm332 = vcmask 1045504
        %v333 = vrot.slane %v328, 2
        %v334 = vrot.slane %v329, 2
        %v335 = vsel %vm332, %v333, %v334
        %v337 = vadd.f32 %v325, %v335
        %s338 = sld [smem:[#allocation2 + $0x7]]
        %v339 = vstv %s338
        %v340 = vmul.f32 %v266, %v339
        %v341 = vmul.f32 %v267, %v339
        %v344 = vrot.slane %v340, 2
        %v345 = vrot.slane %v341, 2
        %v346 = vsel %vm332, %v344, %v345
        %347 = vrot.lane.b32.xlu0 %v346, 127
        %v348 = vpop.permute.xlu0 %347
        %v350 = vadd.f32 %v337, %v348
        %s351 = sld [smem:[#allocation2 + $0x8]]
        %v352 = vstv %s351
        %v353 = vmul.f32 %v266, %v352
        %v354 = vmul.f32 %v267, %v352
        %v357 = vrot.slane %v353, 2
        %v358 = vrot.slane %v354, 2
        %v359 = vsel %vm332, %v357, %v358
        %360 = vrot.lane.b32.xlu0 %v359, 126
        %v361 = vpop.permute.xlu0 %360
        %v363 = vadd.f32 %v350, %v361
        %s364 = sld [smem:[#allocation5]]
        %v365 = vstv %s364
        %v366 = vmul.f32 %v363, %v365
        %v367 = vadd.f32 %v366, 0.0
        %s368 = sld [smem:[#allocation5 + $0x80]]
        %v369 = vstv %s368
        %v370 = vmul.f32 %v363, %v369
        %v371 = vadd.f32 %v370, 0.0
        %s372 = sld [smem:[#allocation5 + $0x100]]
        %v373 = vstv %s372
        %v374 = vmul.f32 %v363, %v373
        %v375 = vadd.f32 %v374, 0.0
        %s376 = sld [smem:[#allocation5 + $0x180]]
        %v377 = vstv %s376
        %v378 = vmul.f32 %v363, %v377
        %v379 = vadd.f32 %v378, 0.0
        %s380 = sld [smem:[#allocation5 + $0x200]]
        %v381 = vstv %s380
        %v382 = vmul.f32 %v363, %v381
        %v383 = vadd.f32 %v382, 0.0
        %s384 = sld [smem:[#allocation5 + $0x280]]
        %v385 = vstv %s384
        %v386 = vmul.f32 %v363, %v385
        %v387 = vadd.f32 %v386, 0.0
        %s388 = sld [smem:[#allocation5 + $0x300]]
        %v389 = vstv %s388
        %v390 = vmul.f32 %v363, %v389
        %v391 = vadd.f32 %v390, 0.0
        %s392 = sld [smem:[#allocation5 + $0x380]]
        %v393 = vstv %s392
        %v394 = vmul.f32 %v363, %v393
        %v395 = vadd.f32 %v394, 0.0
        %s396 = scalar_lea.vmem %s263, 16
        %v397 = vld [vmem:[%s396] sm:$0xff]
        %v398 = vld [vmem:[%s396 + $0x8] sm:$0x3]
        %v399 = vmax.f32 %v397, 0.0
        %v400 = vmax.f32 %v398, 0.0
        %s401 = sld [smem:[#allocation2 + $0x80]]
        %v402 = vstv %s401
        %v403 = vmul.f32 %v399, %v402
        %v404 = vadd.f32 %v403, 0.0
        %s405 = sld [smem:[#allocation2 + $0x81]]
        %v406 = vstv %s405
        %v407 = vmul.f32 %v399, %v406
        %409 = vrot.lane.b32.xlu0 %v407, 127
        %v410 = vpop.permute.xlu0 %409
        %v412 = vadd.f32 %v404, %v410
        %s413 = sld [smem:[#allocation2 + $0x82]]
        %v414 = vstv %s413
        %v415 = vmul.f32 %v399, %v414
        %417 = vrot.lane.b32.xlu0 %v415, 126
        %v418 = vpop.permute.xlu0 %417
        %v420 = vadd.f32 %v412, %v418
        %s421 = sld [smem:[#allocation2 + $0x83]]
        %v422 = vstv %s421
        %v423 = vmul.f32 %v399, %v422
        %v424 = vmul.f32 %v400, %v422
        %v427 = vrot.slane %v423, 1
        %v428 = vrot.slane %v424, 1
        %v429 = vsel %vm294, %v427, %v428
        %v431 = vadd.f32 %v420, %v429
        %s432 = sld [smem:[#allocation2 + $0x84]]
        %v433 = vstv %s432
        %v434 = vmul.f32 %v399, %v433
        %v435 = vmul.f32 %v400, %v433
        %v438 = vrot.slane %v434, 1
        %v439 = vrot.slane %v435, 1
        %v440 = vsel %vm294, %v438, %v439
        %441 = vrot.lane.b32.xlu0 %v440, 127
        %v442 = vpop.permute.xlu0 %441
        %v444 = vadd.f32 %v431, %v442
        %s445 = sld [smem:[#allocation2 + $0x85]]
        %v446 = vstv %s445
        %v447 = vmul.f32 %v399, %v446
        %v448 = vmul.f32 %v400, %v446
        %v451 = vrot.slane %v447, 1
        %v452 = vrot.slane %v448, 1
        %v453 = vsel %vm294, %v451, %v452
        %454 = vrot.lane.b32.xlu0 %v453, 126
        %v455 = vpop.permute.xlu0 %454
        %v457 = vadd.f32 %v444, %v455
        %s458 = sld [smem:[#allocation2 + $0x86]]
        %v459 = vstv %s458
        %v460 = vmul.f32 %v399, %v459
        %v461 = vmul.f32 %v400, %v459
        %v464 = vrot.slane %v460, 2
        %v465 = vrot.slane %v461, 2
        %v466 = vsel %vm332, %v464, %v465
        %v468 = vadd.f32 %v457, %v466
        %s469 = sld [smem:[#allocation2 + $0x87]]
        %v470 = vstv %s469
        %v471 = vmul.f32 %v399, %v470
        %v472 = vmul.f32 %v400, %v470
        %v475 = vrot.slane %v471, 2
        %v476 = vrot.slane %v472, 2
        %v477 = vsel %vm332, %v475, %v476
        %478 = vrot.lane.b32.xlu0 %v477, 127
        %v479 = vpop.permute.xlu0 %478
        %v481 = vadd.f32 %v468, %v479
        %s482 = sld [smem:[#allocation2 + $0x88]]
        %v483 = vstv %s482
        %v484 = vmul.f32 %v399, %v483
        %v485 = vmul.f32 %v400, %v483
        %v488 = vrot.slane %v484, 2
        %v489 = vrot.slane %v485, 2
        %v490 = vsel %vm332, %v488, %v489
        %491 = vrot.lane.b32.xlu0 %v490, 126
        %v492 = vpop.permute.xlu0 %491
        %v494 = vadd.f32 %v481, %v492
        %s495 = sld [smem:[#allocation5 + $0x1]]
        %v496 = vstv %s495
        %v497 = vmul.f32 %v494, %v496
        %v498 = vadd.f32 %v367, %v497
        %s499 = sld [smem:[#allocation5 + $0x81]]
        %v500 = vstv %s499
        %v501 = vmul.f32 %v494, %v500
        %v502 = vadd.f32 %v371, %v501
        %s503 = sld [smem:[#allocation5 + $0x101]]
        %v504 = vstv %s503
        %v505 = vmul.f32 %v494, %v504
        %v506 = vadd.f32 %v375, %v505
        %s507 = sld [smem:[#allocation5 + $0x181]]
        %v508 = vstv %s507
        %v509 = vmul.f32 %v494, %v508
        %v510 = vadd.f32 %v379, %v509
        %s511 = sld [smem:[#allocation5 + $0x201]]
        %v512 = vstv %s511
        %v513 = vmul.f32 %v494, %v512
        %v514 = vadd.f32 %v383, %v513
        %s515 = sld [smem:[#allocation5 + $0x281]]
        %v516 = vstv %s515
        %v517 = vmul.f32 %v494, %v516
        %v518 = vadd.f32 %v387, %v517
        %s519 = sld [smem:[#allocation5 + $0x301]]
        %v520 = vstv %s519
        %v521 = vmul.f32 %v494, %v520
        %v522 = vadd.f32 %v391, %v521
        %s523 = sld [smem:[#allocation5 + $0x381]]
        %v524 = vstv %s523
        %v525 = vmul.f32 %v494, %v524
        %v526 = vadd.f32 %v395, %v525
        %s527 = scalar_lea.vmem %s263, 32
        %v528 = vld [vmem:[%s527] sm:$0xff]
        %v529 = vld [vmem:[%s527 + $0x8] sm:$0x3]
        %v530 = vmax.f32 %v528, 0.0
        %v531 = vmax.f32 %v529, 0.0
        %s532 = sld [smem:[#allocation2 + $0x100]]
        %v533 = vstv %s532
        %v534 = vmul.f32 %v530, %v533
        %v535 = vadd.f32 %v534, 0.0
        %s536 = sld [smem:[#allocation2 + $0x101]]
        %v537 = vstv %s536
        %v538 = vmul.f32 %v530, %v537
        %540 = vrot.lane.b32.xlu0 %v538, 127
        %v541 = vpop.permute.xlu0 %540
        %v543 = vadd.f32 %v535, %v541
        %s544 = sld [smem:[#allocation2 + $0x102]]
        %v545 = vstv %s544
        %v546 = vmul.f32 %v530, %v545
        %548 = vrot.lane.b32.xlu0 %v546, 126
        %v549 = vpop.permute.xlu0 %548
        %v551 = vadd.f32 %v543, %v549
        %s552 = sld [smem:[#allocation2 + $0x103]]
        %v553 = vstv %s552
        %v554 = vmul.f32 %v530, %v553
        %v555 = vmul.f32 %v531, %v553
        %v558 = vrot.slane %v554, 1
        %v559 = vrot.slane %v555, 1
        %v560 = vsel %vm294, %v558, %v559
        %v562 = vadd.f32 %v551, %v560
        %s563 = sld [smem:[#allocation2 + $0x104]]
        %v564 = vstv %s563
        %v565 = vmul.f32 %v530, %v564
        %v566 = vmul.f32 %v531, %v564
        %v569 = vrot.slane %v565, 1
        %v570 = vrot.slane %v566, 1
        %v571 = vsel %vm294, %v569, %v570
        %572 = vrot.lane.b32.xlu0 %v571, 127
        %v573 = vpop.permute.xlu0 %572
        %v575 = vadd.f32 %v562, %v573
        %s576 = sld [smem:[#allocation2 + $0x105]]
        %v577 = vstv %s576
        %v578 = vmul.f32 %v530, %v577
        %v579 = vmul.f32 %v531, %v577
        %v582 = vrot.slane %v578, 1
        %v583 = vrot.slane %v579, 1
        %v584 = vsel %vm294, %v582, %v583
        %585 = vrot.lane.b32.xlu0 %v584, 126
        %v586 = vpop.permute.xlu0 %585
        %v588 = vadd.f32 %v575, %v586
        %s589 = sld [smem:[#allocation2 + $0x106]]
        %v590 = vstv %s589
        %v591 = vmul.f32 %v530, %v590
        %v592 = vmul.f32 %v531, %v590
        %v595 = vrot.slane %v591, 2
        %v596 = vrot.slane %v592, 2
        %v597 = vsel %vm332, %v595, %v596
        %v599 = vadd.f32 %v588, %v597
        %s600 = sld [smem:[#allocation2 + $0x107]]
        %v601 = vstv %s600
        %v602 = vmul.f32 %v530, %v601
        %v603 = vmul.f32 %v531, %v601
        %v606 = vrot.slane %v602, 2
        %v607 = vrot.slane %v603, 2
        %v608 = vsel %vm332, %v606, %v607
        %609 = vrot.lane.b32.xlu0 %v608, 127
        %v610 = vpop.permute.xlu0 %609
        %v612 = vadd.f32 %v599, %v610
        %s613 = sld [smem:[#allocation2 + $0x108]]
        %v614 = vstv %s613
        %v615 = vmul.f32 %v530, %v614
        %v616 = vmul.f32 %v531, %v614
        %v619 = vrot.slane %v615, 2
        %v620 = vrot.slane %v616, 2
        %v621 = vsel %vm332, %v619, %v620
        %622 = vrot.lane.b32.xlu0 %v621, 126
        %v623 = vpop.permute.xlu0 %622
        %v625 = vadd.f32 %v612, %v623
        %s626 = sld [smem:[#allocation5 + $0x2]]
        %v627 = vstv %s626
        %v628 = vmul.f32 %v625, %v627
        %v629 = vadd.f32 %v498, %v628
        %s630 = sld [smem:[#allocation5 + $0x82]]
        %v631 = vstv %s630
        %v632 = vmul.f32 %v625, %v631
        %v633 = vadd.f32 %v502, %v632
        %s634 = sld [smem:[#allocation5 + $0x102]]
        %v635 = vstv %s634
        %v636 = vmul.f32 %v625, %v635
        %v637 = vadd.f32 %v506, %v636
        %s638 = sld [smem:[#allocation5 + $0x182]]
        %v639 = vstv %s638
        %v640 = vmul.f32 %v625, %v639
        %v641 = vadd.f32 %v510, %v640
        %s642 = sld [smem:[#allocation5 + $0x202]]
        %v643 = vstv %s642
        %v644 = vmul.f32 %v625, %v643
        %v645 = vadd.f32 %v514, %v644
        %s646 = sld [smem:[#allocation5 + $0x282]]
        %v647 = vstv %s646
        %v648 = vmul.f32 %v625, %v647
        %v649 = vadd.f32 %v518, %v648
        %s650 = sld [smem:[#allocation5 + $0x302]]
        %v651 = vstv %s650
        %v652 = vmul.f32 %v625, %v651
        %v653 = vadd.f32 %v522, %v652
        %s654 = sld [smem:[#allocation5 + $0x382]]
        %v655 = vstv %s654
        %v656 = vmul.f32 %v625, %v655
        %v657 = vadd.f32 %v526, %v656
        %s658 = scalar_lea.vmem %s263, 48
        %v659 = vld [vmem:[%s658] sm:$0xff]
        %v660 = vld [vmem:[%s658 + $0x8] sm:$0x3]
        %v661 = vmax.f32 %v659, 0.0
        %v662 = vmax.f32 %v660, 0.0
        %s663 = sld [smem:[#allocation2 + $0x180]]
        %v664 = vstv %s663
        %v665 = vmul.f32 %v661, %v664
        %v666 = vadd.f32 %v665, 0.0
        %s667 = sld [smem:[#allocation2 + $0x181]]
        %v668 = vstv %s667
        %v669 = vmul.f32 %v661, %v668
        %671 = vrot.lane.b32.xlu0 %v669, 127
        %v672 = vpop.permute.xlu0 %671
        %v674 = vadd.f32 %v666, %v672
        %s675 = sld [smem:[#allocation2 + $0x182]]
        %v676 = vstv %s675
        %v677 = vmul.f32 %v661, %v676
        %679 = vrot.lane.b32.xlu0 %v677, 126
        %v680 = vpop.permute.xlu0 %679
        %v682 = vadd.f32 %v674, %v680
        %s683 = sld [smem:[#allocation2 + $0x183]]
        %v684 = vstv %s683
        %v685 = vmul.f32 %v661, %v684
        %v686 = vmul.f32 %v662, %v684
        %v689 = vrot.slane %v685, 1
        %v690 = vrot.slane %v686, 1
        %v691 = vsel %vm294, %v689, %v690
        %v693 = vadd.f32 %v682, %v691
        %s694 = sld [smem:[#allocation2 + $0x184]]
        %v695 = vstv %s694
        %v696 = vmul.f32 %v661, %v695
        %v697 = vmul.f32 %v662, %v695
        %v700 = vrot.slane %v696, 1
        %v701 = vrot.slane %v697, 1
        %v702 = vsel %vm294, %v700, %v701
        %703 = vrot.lane.b32.xlu0 %v702, 127
        %v704 = vpop.permute.xlu0 %703
        %v706 = vadd.f32 %v693, %v704
        %s707 = sld [smem:[#allocation2 + $0x185]]
        %v708 = vstv %s707
        %v709 = vmul.f32 %v661, %v708
        %v710 = vmul.f32 %v662, %v708
        %v713 = vrot.slane %v709, 1
        %v714 = vrot.slane %v710, 1
        %v715 = vsel %vm294, %v713, %v714
        %716 = vrot.lane.b32.xlu0 %v715, 126
        %v717 = vpop.permute.xlu0 %716
        %v719 = vadd.f32 %v706, %v717
        %s720 = sld [smem:[#allocation2 + $0x186]]
        %v721 = vstv %s720
        %v722 = vmul.f32 %v661, %v721
        %v723 = vmul.f32 %v662, %v721
        %v726 = vrot.slane %v722, 2
        %v727 = vrot.slane %v723, 2
        %v728 = vsel %vm332, %v726, %v727
        %v730 = vadd.f32 %v719, %v728
        %s731 = sld [smem:[#allocation2 + $0x187]]
        %v732 = vstv %s731
        %v733 = vmul.f32 %v661, %v732
        %v734 = vmul.f32 %v662, %v732
        %v737 = vrot.slane %v733, 2
        %v738 = vrot.slane %v734, 2
        %v739 = vsel %vm332, %v737, %v738
        %740 = vrot.lane.b32.xlu0 %v739, 127
        %v741 = vpop.permute.xlu0 %740
        %v743 = vadd.f32 %v730, %v741
        %s744 = sld [smem:[#allocation2 + $0x188]]
        %v745 = vstv %s744
        %v746 = vmul.f32 %v661, %v745
        %v747 = vmul.f32 %v662, %v745
        %v750 = vrot.slane %v746, 2
        %v751 = vrot.slane %v747, 2
        %v752 = vsel %vm332, %v750, %v751
        %753 = vrot.lane.b32.xlu0 %v752, 126
        %v754 = vpop.permute.xlu0 %753
        %v756 = vadd.f32 %v743, %v754
        %s757 = sld [smem:[#allocation5 + $0x3]]
        %v758 = vstv %s757
        %v759 = vmul.f32 %v756, %v758
        %v760 = vadd.f32 %v629, %v759
        %s761 = sld [smem:[#allocation5 + $0x83]]
        %v762 = vstv %s761
        %v763 = vmul.f32 %v756, %v762
        %v764 = vadd.f32 %v633, %v763
        %s765 = sld [smem:[#allocation5 + $0x103]]
        %v766 = vstv %s765
        %v767 = vmul.f32 %v756, %v766
        %v768 = vadd.f32 %v637, %v767
        %s769 = sld [smem:[#allocation5 + $0x183]]
        %v770 = vstv %s769
        %v771 = vmul.f32 %v756, %v770
        %v772 = vadd.f32 %v641, %v771
        %s773 = sld [smem:[#allocation5 + $0x203]]
        %v774 = vstv %s773
        %v775 = vmul.f32 %v756, %v774
        %v776 = vadd.f32 %v645, %v775
        %s777 = sld [smem:[#allocation5 + $0x283]]
        %v778 = vstv %s777
        %v779 = vmul.f32 %v756, %v778
        %v780 = vadd.f32 %v649, %v779
        %s781 = sld [smem:[#allocation5 + $0x303]]
        %v782 = vstv %s781
        %v783 = vmul.f32 %v756, %v782
        %v784 = vadd.f32 %v653, %v783
        %s785 = sld [smem:[#allocation5 + $0x383]]
        %v786 = vstv %s785
        %v787 = vmul.f32 %v756, %v786
        %v788 = vadd.f32 %v657, %v787
        %vm789 = vcmask 130048
        %790 = vst.msk [vmem:[%s247] sm:$0xff] %vm789, %v760
        %v791 = vsel %vm789, %v760, 0.0
        %v792 = vrot.slane %v791, 4
        %v793 = vadd.f32 %v791, %v792
        %v794 = vrot.slane %v793, 2
        %v795 = vadd.f32 %v793, %v794
        %v796 = vrot.slane %v795, 1
        %v797 = vadd.f32 %v795, %v796
        %v798 = vmul.f32 %v760, %v760
        %v799 = vsel %vm789, %v798, 0.0
        %v800 = vrot.slane %v799, 4
        %v801 = vadd.f32 %v799, %v800
        %v802 = vrot.slane %v801, 2
        %v803 = vadd.f32 %v801, %v802
        %v804 = vrot.slane %v803, 1
        %v805 = vadd.f32 %v803, %v804
        %s806 = scalar_lea.vmem %s247, 8 [#allocation7]
        %807 = vst.msk [vmem:[%s806] sm:$0xff] %vm789, %v764
        %v808 = vsel %vm789, %v764, 0.0
        %v809 = vrot.slane %v808, 4
        %v810 = vadd.f32 %v808, %v809
        %v811 = vrot.slane %v810, 2
        %v812 = vadd.f32 %v810, %v811
        %v813 = vrot.slane %v812, 1
        %v814 = vadd.f32 %v812, %v813
        %v815 = vmul.f32 %v764, %v764
        %v816 = vsel %vm789, %v815, 0.0
        %v817 = vrot.slane %v816, 4
        %v818 = vadd.f32 %v816, %v817
        %v819 = vrot.slane %v818, 2
        %v820 = vadd.f32 %v818, %v819
        %v821 = vrot.slane %v820, 1
        %v822 = vadd.f32 %v820, %v821
        %s823 = scalar_lea.vmem %s247, 16 [#allocation7]
        %824 = vst.msk [vmem:[%s823] sm:$0xff] %vm789, %v768
        %v825 = vsel %vm789, %v768, 0.0
        %v826 = vrot.slane %v825, 4
        %v827 = vadd.f32 %v825, %v826
        %v828 = vrot.slane %v827, 2
        %v829 = vadd.f32 %v827, %v828
        %v830 = vrot.slane %v829, 1
        %v831 = vadd.f32 %v829, %v830
        %v832 = vmul.f32 %v768, %v768
        %v833 = vsel %vm789, %v832, 0.0
        %v834 = vrot.slane %v833, 4
        %v835 = vadd.f32 %v833, %v834
        %v836 = vrot.slane %v835, 2
        %v837 = vadd.f32 %v835, %v836
        %v838 = vrot.slane %v837, 1
        %v839 = vadd.f32 %v837, %v838
        %s840 = scalar_lea.vmem %s247, 24 [#allocation7]
        %841 = vst.msk [vmem:[%s840] sm:$0xff] %vm789, %v772
        %v842 = vsel %vm789, %v772, 0.0
        %v843 = vrot.slane %v842, 4
        %v844 = vadd.f32 %v842, %v843
        %v845 = vrot.slane %v844, 2
        %v846 = vadd.f32 %v844, %v845
        %v847 = vrot.slane %v846, 1
        %v848 = vadd.f32 %v846, %v847
        %v849 = vmul.f32 %v772, %v772
        %v850 = vsel %vm789, %v849, 0.0
        %v851 = vrot.slane %v850, 4
        %v852 = vadd.f32 %v850, %v851
        %v853 = vrot.slane %v852, 2
        %v854 = vadd.f32 %v852, %v853
        %v855 = vrot.slane %v854, 1
        %v856 = vadd.f32 %v854, %v855
        %s857 = scalar_lea.vmem %s247, 32 [#allocation7]
        %858 = vst.msk [vmem:[%s857] sm:$0xff] %vm789, %v776
        %v859 = vsel %vm789, %v776, 0.0
        %v860 = vrot.slane %v859, 4
        %v861 = vadd.f32 %v859, %v860
        %v862 = vrot.slane %v861, 2
        %v863 = vadd.f32 %v861, %v862
        %v864 = vrot.slane %v863, 1
        %v865 = vadd.f32 %v863, %v864
        %v866 = vmul.f32 %v776, %v776
        %v867 = vsel %vm789, %v866, 0.0
        %v868 = vrot.slane %v867, 4
        %v869 = vadd.f32 %v867, %v868
        %v870 = vrot.slane %v869, 2
        %v871 = vadd.f32 %v869, %v870
        %v872 = vrot.slane %v871, 1
        %v873 = vadd.f32 %v871, %v872
        %s874 = scalar_lea.vmem %s247, 40 [#allocation7]
        %875 = vst.msk [vmem:[%s874] sm:$0xff] %vm789, %v780
        %v876 = vsel %vm789, %v780, 0.0
        %v877 = vrot.slane %v876, 4
        %v878 = vadd.f32 %v876, %v877
        %v879 = vrot.slane %v878, 2
        %v880 = vadd.f32 %v878, %v879
        %v881 = vrot.slane %v880, 1
        %v882 = vadd.f32 %v880, %v881
        %v883 = vmul.f32 %v780, %v780
        %v884 = vsel %vm789, %v883, 0.0
        %v885 = vrot.slane %v884, 4
        %v886 = vadd.f32 %v884, %v885
        %v887 = vrot.slane %v886, 2
        %v888 = vadd.f32 %v886, %v887
        %v889 = vrot.slane %v888, 1
        %v890 = vadd.f32 %v888, %v889
        %s891 = scalar_lea.vmem %s247, 48 [#allocation7]
        %892 = vst.msk [vmem:[%s891] sm:$0xff] %vm789, %v784
        %v893 = vsel %vm789, %v784, 0.0
        %v894 = vrot.slane %v893, 4
        %v895 = vadd.f32 %v893, %v894
        %v896 = vrot.slane %v895, 2
        %v897 = vadd.f32 %v895, %v896
        %v898 = vrot.slane %v897, 1
        %v899 = vadd.f32 %v897, %v898
        %v900 = vmul.f32 %v784, %v784
        %v901 = vsel %vm789, %v900, 0.0
        %v902 = vrot.slane %v901, 4
        %v903 = vadd.f32 %v901, %v902
        %v904 = vrot.slane %v903, 2
        %v905 = vadd.f32 %v903, %v904
        %v906 = vrot.slane %v905, 1
        %v907 = vadd.f32 %v905, %v906
        %s908 = scalar_lea.vmem %s247, 56 [#allocation7]
        %909 = vst.msk [vmem:[%s908] sm:$0xff] %vm789, %v788
        %v910 = vsel %vm789, %v788, 0.0
        %v911 = vrot.slane %v910, 4
        %v912 = vadd.f32 %v910, %v911
        %v913 = vrot.slane %v912, 2
        %v914 = vadd.f32 %v912, %v913
        %v915 = vrot.slane %v914, 1
        %v916 = vadd.f32 %v914, %v915
        %v917 = vmul.f32 %v788, %v788
        %v918 = vsel %vm789, %v917, 0.0
        %v919 = vrot.slane %v918, 4
        %v920 = vadd.f32 %v918, %v919
        %v921 = vrot.slane %v920, 2
        %v922 = vadd.f32 %v920, %v921
        %v923 = vrot.slane %v922, 1
        %v924 = vadd.f32 %v922, %v923
        %vm925 = vcmask 1040384
        %v926 = vsel %vm925, %v797, %v814
        %vm927 = vcmask 1041408
        %v928 = vsel %vm927, %v926, %v831
        %vm929 = vcmask 1042432
        %v930 = vsel %vm929, %v928, %v848
        %vm931 = vcmask 1043456
        %v932 = vsel %vm931, %v930, %v865
        %vm933 = vcmask 1044480
        %v934 = vsel %vm933, %v932, %v882
        %v935 = vsel %vm332, %v934, %v899
        %v936 = vsel %vm294, %v935, %v916
        %937 = vst.msk [vmem:[%s254] sm:$0xff] %vm789, %v936
        %v938 = vsel %vm925, %v805, %v822
        %v939 = vsel %vm927, %v938, %v839
        %v940 = vsel %vm929, %v939, %v856
        %v941 = vsel %vm931, %v940, %v873
        %v942 = vsel %vm933, %v941, %v890
        %v943 = vsel %vm332, %v942, %v907
        %v944 = vsel %vm294, %v943, %v924
        %s945 = scalar_lea.vmem %s254, 8 [#allocation8]
        %946 = vst.msk [vmem:[%s945] sm:$0xff] %vm789, %v944
        %s947 = sand.u32 %s116, 1
        %s948 = scalar_lea.sflag [#allocation3], %s947
        %s949 = sand.u32 %s116, 1
        %s950 = smul.addr %s949, 64
        %s951 = scalar_lea.vmem [#allocation7], %s950
        %s952 = sand.u32 %s144, 1
        %s953 = scalar_lea.sflag [#allocation9], %s952
        %s954 = sand.u32 %s144, 1
        %s955 = smul.addr %s954, 16
        %s956 = scalar_lea.vmem [#allocation8], %s955
        // Predicated region
        $region41: #{tpu_custom_call.1} parent=31 // pred_check
          %p957 = pneg %p126
        $region42: #{tpu_custom_call.1} parent=31 // pred_check_branch
          %959 = sbr.rel (%p957) target = $region44
        $region43: #{tpu_custom_call.1} parent=31 // pred_region
          %s961 = ssub.s32 1024, 1024
          %962 = vsyncadd %s948, %s961
          %s963 = smul.addr %s28, 16
          %s964 = sadd.s32 %s29, %s963
          %s965 = smul.addr %s964, 128
          %s966 = scalar_lea.hbm %s3, %s965
          %s967 = sshll.u32 %s951, 4
          %s968 = int_to_ptr.vmem [resolvable:$true] %s967
          %973 = dma.vmem_to_hbm [thread:$0]  %s968, 1024, %s966, %s948, 128, 256, 8
        $region44: #{tpu_custom_call.1} parent=31 // pred_fallthru
          _
        // Predicated region
        $region45: #{tpu_custom_call.1} parent=31 // pred_check
          %p974 = pneg %p154
        $region46: #{tpu_custom_call.1} parent=31 // pred_check_branch
          %976 = sbr.rel (%p974) target = $region48
        $region47: #{tpu_custom_call.1} parent=31 // pred_region
          %s978 = ssub.s32 256, 256
          %979 = vsyncadd %s953, %s978
          %s980 = smul.addr %s29, 2
          %s981 = smul.addr %s28, 4
          %s982 = sadd.s32 %s980, %s981
          %s983 = smul.addr %s982, 128
          %s984 = scalar_lea.hbm %s4, %s983
          %s985 = sshll.u32 %s956, 4
          %s986 = int_to_ptr.vmem [resolvable:$true] %s985
          %991 = dma.vmem_to_hbm [thread:$0]  %s986, 256, %s984, %s953, 128, 128, 8
        $region48: #{tpu_custom_call.1} parent=31 // pred_fallthru
          _
      $region32: #{tpu_custom_call.1} parent=5 // pred_fallthru
        _
      %p992 = scmp.le.s32.totalorder 2, %s19
      // Predicated region
      $region49: #{tpu_custom_call.1} parent=5 // pred_check
        %p993 = pneg %p992
      $region50: #{tpu_custom_call.1} parent=5 // pred_check_branch
        %995 = sbr.rel (%p993) target = $region52
      $region51: #{tpu_custom_call.1} parent=5 // pred_region
        %s996 = ssub.s32 %s19, 2
        // Predicated region
        $region53: #{tpu_custom_call.1} parent=51 // pred_check
          %p997 = pneg %p132
        $region54: #{tpu_custom_call.1} parent=51 // pred_check_branch
          %999 = sbr.rel (%p997) target = $region56
        $region55: #{tpu_custom_call.1} parent=51 // pred_region
          %s1000 = sand.u32 %s117, 1
          %s1001 = scalar_lea.sflag [#allocation3], %s1000
          %s1002 = sand.u32 %s117, 1
          %s1003 = smul.addr %s1002, 64
          %s1004 = scalar_lea.vmem [#allocation7], %s1003
          %1005 = dma.done %s1001, 1024
        $region56: #{tpu_custom_call.1} parent=51 // pred_fallthru
          _
        // Predicated region
        $region57: #{tpu_custom_call.1} parent=51 // pred_check
          %p1006 = pneg %p160
        $region58: #{tpu_custom_call.1} parent=51 // pred_check_branch
          %1008 = sbr.rel (%p1006) target = $region60
        $region59: #{tpu_custom_call.1} parent=51 // pred_region
          %s1009 = sand.u32 %s145, 1
          %s1010 = scalar_lea.sflag [#allocation9], %s1009
          %s1011 = sand.u32 %s145, 1
          %s1012 = smul.addr %s1011, 16
          %s1013 = scalar_lea.vmem [#allocation8], %s1012
          %1014 = dma.done %s1010, 256
        $region60: #{tpu_custom_call.1} parent=51 // pred_fallthru
          _
      $region52: #{tpu_custom_call.1} parent=5 // pred_fallthru
        _
    $region6: #{tpu_custom_call.1} parent=1 // loop_footer
      %s23 = sadd.s32 1, %s19
    $region7: #{tpu_custom_call.1} parent=1 // loop_footer_branch
      %18 = sbr.rel target = $region3
    $region8: #{tpu_custom_call.1} parent=1 // loop_exit
      _
    %1015 = vsyncpa [#allocation3], 1
    %s1016 = scalar_lea.sflag [#allocation3], 1
    %1017 = vsyncpa %s1016, 1
    %1018 = vsyncpa [#allocation9], 1
    %s1019 = scalar_lea.sflag [#allocation9], 1
    %1020 = vsyncpa %s1019, 1
    %1021 = vsyncpa [#allocation4], 1
    %s1022 = scalar_lea.sflag [#allocation4], 1
    %1023 = vsyncpa %s1022, 1
    %1024 = vsyncpa [#allocation6], 1

</llo_original>
